<compile_context>
chip_gen: v5e
topology: v5e:2x2
jax: 0.10.0
libtpu: 0.0.40
codegen_flags: <defaults>
</compile_context>

<pallas_src>
import functools

import jax
import jax.numpy as jnp
from jax import lax
from jax.experimental import pallas as pl
from jax.experimental.pallas import tpu as pltpu


def _round_up(a, b):
    return (a + b - 1) // b * b


def gine_kernel(src_ref, dst_ref, ea_ref, x_ref, emb_ref,
                w1_ref, b1_ref, g_ref, beta_ref, w2_ref, b2_ref,
                eps_ref, out_ref, acc_ref, *, emb_dim, tn):
    i = pl.program_id(0)                 # node tile (parallel)
    k = pl.program_id(1)                 # edge tile (reduction, innermost)

    @pl.when(k == 0)
    def _():
        acc_ref[...] = jnp.zeros_like(acc_ref)

    x_all = x_ref[...]                   # (N_pad, D_in_p)  resident
    emb = emb_ref[...]                   # (K_pad, D_in_p)  resident
    src_row = src_ref[0]                 # (1, TE) int32, lane-dense
    dst_row = dst_ref[0]                 # (1, TE)
    ea_row = ea_ref[0]                   # (1, TE)

    n_pad = x_all.shape[0]
    k_pad = emb.shape[0]
    te = src_row.shape[1]

    # ---- gather x[src] for this edge tile: (N_pad, TE)^T @ (N_pad, D) -> (TE, D) ----
    g_oh = (lax.broadcasted_iota(jnp.int32, (n_pad, te), 0) == src_row
            ).astype(jnp.float32)
    x_src = lax.dot_general(g_oh, x_all, (((0,), (0,)), ((), ())),
                            preferred_element_type=jnp.float32)

    # ---- edge-embedding lookup: (K_pad, TE)^T @ (K_pad, D) -> (TE, D) ----
    e_oh = (lax.broadcasted_iota(jnp.int32, (k_pad, te), 0) == ea_row
            ).astype(jnp.float32)
    e_emb = lax.dot_general(e_oh, emb, (((0,), (0,)), ((), ())),
                            preferred_element_type=jnp.float32)

    # GINE message
    msg = jnp.maximum(x_src + e_emb, 0.0)               # (TE, D_in_p)

    # ---- scatter-add into this node tile: (TN, TE) @ (TE, D) ----
    base = i * tn
    s_oh = ((base + lax.broadcasted_iota(jnp.int32, (tn, te), 0)) == dst_row
            ).astype(jnp.float32)
    acc_ref[...] += jnp.dot(s_oh, msg, preferred_element_type=jnp.float32)

    # ---- finalize once per node tile: (1+eps)*x + agg -> Linear/LayerNorm/ReLU/Linear ----
    @pl.when(k == pl.num_programs(1) - 1)
    def _():
        start = pl.multiple_of(i * tn, tn)
        x_blk = x_ref[pl.ds(start, tn), :]               # (TN, D_in_p)
        eps = eps_ref[0, 0]
        h = (1.0 + eps) * x_blk + acc_ref[...]

        h1 = jnp.dot(h, w1_ref[...],
                     preferred_element_type=jnp.float32) + b1_ref[...]
        d_emb_p = h1.shape[-1]
        mask = (lax.broadcasted_iota(jnp.int32, (1, d_emb_p), 1) < emb_dim
                ).astype(jnp.float32)
        inv_d = 1.0 / float(emb_dim)
        mu = jnp.sum(h1, axis=-1, keepdims=True) * inv_d     # padded cols of h1 are 0
        diff = (h1 - mu) * mask
        var = jnp.sum(diff * diff, axis=-1, keepdims=True) * inv_d
        hn = diff * lax.rsqrt(var + 1e-5) * g_ref[...] + beta_ref[...]
        hr = jnp.maximum(hn, 0.0)
        out_ref[...] = (jnp.dot(hr, w2_ref[...],
                                preferred_element_type=jnp.float32) + b2_ref[...])


def custom_gine_forward(x, edge_index, edge_attr, params, *, tn=32, te=128):
    f32 = jnp.float32
    N, in_dim = x.shape
    E = edge_index.shape[1]
    emb = params["emb"]
    K = emb.shape[0]
    emb_dim = params["w2"].shape[1]

    LANE = 128
    d_in_p = _round_up(in_dim, LANE)
    d_emb_p = _round_up(emb_dim, LANE)
    n_pad = _round_up(N, tn)
    e_pad = _round_up(E, te)
    k_pad = _round_up(K, 8)
    ntn = n_pad // tn
    nte = e_pad // te

    # ---- pad features / parameters to 128 lanes (zeros are exact for LN w/ masking) ----
    x_p = jnp.zeros((n_pad, d_in_p), f32).at[:N, :in_dim].set(x.astype(f32))
    emb_p = jnp.zeros((k_pad, d_in_p), f32).at[:K, :in_dim].set(emb.astype(f32))
    w1_p = jnp.zeros((d_in_p, d_emb_p), f32).at[:in_dim, :emb_dim].set(params["w1"])
    b1_p = jnp.zeros((1, d_emb_p), f32).at[:, :emb_dim].set(
        params["b1"].reshape(1, emb_dim))
    g_p = jnp.zeros((1, d_emb_p), f32).at[:, :emb_dim].set(
        params["gamma"].reshape(1, emb_dim))
    be_p = jnp.zeros((1, d_emb_p), f32).at[:, :emb_dim].set(
        params["beta"].reshape(1, emb_dim))
    w2_p = jnp.zeros((d_emb_p, d_emb_p), f32).at[:emb_dim, :emb_dim].set(params["w2"])
    b2_p = jnp.zeros((1, d_emb_p), f32).at[:, :emb_dim].set(
        params["b2"].reshape(1, emb_dim))

    # ---- lane-dense edge indices; padded edges get dst = n_pad (dropped by scatter) ----
    src = edge_index[0].astype(jnp.int32)
    dst = edge_index[1].astype(jnp.int32)
    ea = edge_attr.astype(jnp.int32)
    src_p = jnp.zeros((e_pad,), jnp.int32).at[:E].set(src).reshape(nte, 1, te)
    ea_p = jnp.zeros((e_pad,), jnp.int32).at[:E].set(ea).reshape(nte, 1, te)
    dst_p = jnp.full((e_pad,), n_pad, jnp.int32).at[:E].set(dst).reshape(nte, 1, te)

    eps = jnp.asarray(params["eps"], f32).reshape(1, 1)

    idx_full = lambda i, k: (0, 0)
    idx_edge = lambda i, k: (k, 0, 0)

    flops = int(2 * e_pad * n_pad * d_in_p * ntn       # gather one-hot matmuls
                + 2 * e_pad * k_pad * d_in_p * ntn     # edge-embedding lookups
                + 2 * e_pad * n_pad * d_in_p           # scatter-add matmuls
                + 2 * n_pad * d_in_p * d_emb_p         # MLP linear 1
                + 2 * n_pad * d_emb_p * d_emb_p)       # MLP linear 2
    bytes_accessed = int(4 * (x_p.size + emb_p.size + w1_p.size + w2_p.size
                              + b1_p.size + g_p.size + be_p.size + b2_p.size
                              + src_p.size + dst_p.size + ea_p.size
                              + n_pad * d_emb_p))
    cost = pl.CostEstimate(flops=flops, transcendentals=int(n_pad),
                           bytes_accessed=bytes_accessed)

    kernel = functools.partial(gine_kernel, emb_dim=emb_dim, tn=tn)

    out_p = pl.pallas_call(
        kernel,
        out_shape=jax.ShapeDtypeStruct((n_pad, d_emb_p), f32),
        grid=(ntn, nte),
        in_specs=[
            pl.BlockSpec((1, 1, te), idx_edge),              # src (lane-dense)
            pl.BlockSpec((1, 1, te), idx_edge),              # dst
            pl.BlockSpec((1, 1, te), idx_edge),              # edge_attr
            pl.BlockSpec((n_pad, d_in_p), idx_full),         # x (VMEM resident)
            pl.BlockSpec((k_pad, d_in_p), idx_full),         # edge embedding table
            pl.BlockSpec((d_in_p, d_emb_p), idx_full),       # w1
            pl.BlockSpec((1, d_emb_p), idx_full),            # b1
            pl.BlockSpec((1, d_emb_p), idx_full),            # gamma
            pl.BlockSpec((1, d_emb_p), idx_full),            # beta
            pl.BlockSpec((d_emb_p, d_emb_p), idx_full),      # w2
            pl.BlockSpec((1, d_emb_p), idx_full),            # b2
            pl.BlockSpec(memory_space=pltpu.MemorySpace.SMEM),  # eps scalar
        ],
        out_specs=pl.BlockSpec((tn, d_emb_p), lambda i, k: (i, 0)),
        scratch_shapes=[pltpu.VMEM((tn, d_in_p), jnp.float32)],
        compiler_params=pltpu.CompilerParams(
            dimension_semantics=("parallel", "arbitrary"),
            vmem_limit_bytes=64 * 1024 * 1024),
        cost_estimate=cost,
    )(src_p, dst_p, ea_p, x_p, emb_p, w1_p, b1_p, g_p, be_p, w2_p, b2_p, eps)

    return out_p[:N, :emb_dim]


def ref_forward(x, edge_index, edge_attr, p):
    """Pure-JAX reference of CustomGINE forward (GINEConv semantics)."""
    src, dst = edge_index[0], edge_index[1]
    e = p["emb"][edge_attr]
    msg = jnp.maximum(x[src] + e, 0.0)
    agg = jax.ops.segment_sum(msg, dst, num_segments=x.shape[0])
    h = (1.0 + p["eps"]) * x + agg
    h1 = h @ p["w1"] + p["b1"]
    mu = h1.mean(-1, keepdims=True)
    var = ((h1 - mu) ** 2).mean(-1, keepdims=True)
    hn = (h1 - mu) / jnp.sqrt(var + 1e-5) * p["gamma"] + p["beta"]
    return jnp.maximum(hn, 0.0) @ p["w2"] + p["b2"]


def init_params(key, in_dim, emb_dim, num_edge_emb):
    ks = jax.random.split(key, 6)
    scale1 = 1.0 / jnp.sqrt(in_dim)
    scale2 = 1.0 / jnp.sqrt(emb_dim)
    return {
        "emb": jax.random.normal(ks[0], (num_edge_emb, in_dim), jnp.float32),
        "w1": jax.random.uniform(ks[1], (in_dim, emb_dim), jnp.float32,
                                 -scale1, scale1),
        "b1": jax.random.uniform(ks[2], (1, emb_dim), jnp.float32,
                                 -scale1, scale1),
        "gamma": jnp.ones((1, emb_dim), jnp.float32),
        "beta": jnp.zeros((1, emb_dim), jnp.float32),
        "w2": jax.random.uniform(ks[3], (emb_dim, emb_dim), jnp.float32,
                                 -scale2, scale2),
        "b2": jax.random.uniform(ks[4], (1, emb_dim), jnp.float32,
                                 -scale2, scale2),
        "eps": 0.0,   # train_eps=True, initial value 0.0
    }


if __name__ == "__main__":
    in_dim, emb_dim, num_edge_emb = 16, 32, 4
    N, E = 64, 300            # small but exercises 2 node tiles x 3 edge tiles

    key = jax.random.PRNGKey(0)
    k_x, k_ei, k_ea, k_p = jax.random.split(key, 4)

    x = jax.random.normal(k_x, (N, in_dim), jnp.float32)
    edge_index = jax.random.randint(k_ei, (2, E), 0, N, jnp.int32)
    edge_attr = jax.random.randint(k_ea, (E,), 0, num_edge_emb, jnp.int32)
    params = init_params(k_p, in_dim, emb_dim, num_edge_emb)
    params["eps"] = 0.1       # simulate a trained eps to exercise the (1+eps)*x path

    out = custom_gine_forward(x, edge_index, edge_attr, params)
    out = jax.block_until_ready(out)

    ref = ref_forward(x, edge_index, edge_attr, params)
    assert out.shape == (N, emb_dim)
    max_err = float(jnp.max(jnp.abs(out - ref)))
    assert jnp.allclose(out, ref, atol=2e-4, rtol=2e-4), \
        f"mismatch vs JAX reference (max abs err {max_err})"

    print("KERNEL_OK")
</pallas_src>

<mosaic_0001>
module attributes {stable_mosaic.version = 11 : i64} {
  func.func @gine_kernel(%arg0: i32, %arg1: i32, %arg2: memref<1x1x128xi32, #tpu.memory_space<vmem>>, %arg3: memref<1x1x128xi32, #tpu.memory_space<vmem>>, %arg4: memref<1x1x128xi32, #tpu.memory_space<vmem>>, %arg5: memref<64x128xf32, #tpu.memory_space<vmem>>, %arg6: memref<8x128xf32, #tpu.memory_space<vmem>>, %arg7: memref<128x128xf32, #tpu.memory_space<vmem>>, %arg8: memref<1x128xf32, #tpu.memory_space<vmem>>, %arg9: memref<1x128xf32, #tpu.memory_space<vmem>>, %arg10: memref<1x128xf32, #tpu.memory_space<vmem>>, %arg11: memref<128x128xf32, #tpu.memory_space<vmem>>, %arg12: memref<1x128xf32, #tpu.memory_space<vmem>>, %arg13: memref<1x1xf32, #tpu.memory_space<smem>>, %arg14: memref<32x128xf32, #tpu.memory_space<vmem>>, %arg15: memref<32x128xf32, #tpu.memory_space<vmem>>) attributes {dimension_semantics = [#tpu.dimension_semantics<parallel>, #tpu.dimension_semantics<arbitrary>], iteration_bounds = array<i64: 2, 3>, scalar_prefetch = 0 : i64, scratch_operands = 1 : i64, tpu.core_type = #tpu.core_type<tc>, window_params = [{transform_indices = @transform_0, window_bounds = array<i64: 1, 1, 128>}, {transform_indices = @transform_1, window_bounds = array<i64: 1, 1, 128>}, {transform_indices = @transform_2, window_bounds = array<i64: 1, 1, 128>}, {pipeline_mode = #tpu.pipeline_mode<synchronous>, transform_indices = @transform_3, window_bounds = array<i64: 64, 128>}, {pipeline_mode = #tpu.pipeline_mode<synchronous>, transform_indices = @transform_4, window_bounds = array<i64: 8, 128>}, {pipeline_mode = #tpu.pipeline_mode<synchronous>, transform_indices = @transform_5, window_bounds = array<i64: 128, 128>}, {pipeline_mode = #tpu.pipeline_mode<synchronous>, transform_indices = @transform_6, window_bounds = array<i64: 1, 128>}, {pipeline_mode = #tpu.pipeline_mode<synchronous>, transform_indices = @transform_7, window_bounds = array<i64: 1, 128>}, {pipeline_mode = #tpu.pipeline_mode<synchronous>, transform_indices = @transform_8, window_bounds = array<i64: 1, 128>}, {pipeline_mode = #tpu.pipeline_mode<synchronous>, transform_indices = @transform_9, window_bounds = array<i64: 128, 128>}, {pipeline_mode = #tpu.pipeline_mode<synchronous>, transform_indices = @transform_10, window_bounds = array<i64: 1, 128>}, {transform_indices = @transform_11, window_bounds = array<i64: 1, 1>}, {transform_indices = @transform_12, window_bounds = array<i64: 32, 128>}]} {
    %c0_i32 = arith.constant 0 : i32
    %0 = arith.cmpi eq, %arg1, %c0_i32 : i32
    %1 = arith.extui %0 : i1 to i32
    %c0_i32_0 = arith.constant 0 : i32
    %2 = arith.cmpi ne, %1, %c0_i32_0 : i32
    scf.if %2 {
      %cst_21 = arith.constant 0.000000e+00 : f32
      %41 = vector.broadcast %cst_21 : f32 to vector<32x128xf32>
      %c0_22 = arith.constant 0 : index
      %c0_23 = arith.constant 0 : index
      %42 = vector.load %arg15[%c0_22, %c0_23] : memref<32x128xf32, #tpu.memory_space<vmem>>, vector<32x128xf32>
      tpu.vector_store %arg15[%c0_22, %c0_23], %41 {strides = array<i32>} : memref<32x128xf32, #tpu.memory_space<vmem>>, vector<32x128xf32>,
    } else {
    }
    %c0 = arith.constant 0 : index
    %c0_1 = arith.constant 0 : index
    %3 = vector.load %arg5[%c0, %c0_1] : memref<64x128xf32, #tpu.memory_space<vmem>>, vector<64x128xf32>
    %c0_2 = arith.constant 0 : index
    %c0_3 = arith.constant 0 : index
    %4 = vector.load %arg6[%c0_2, %c0_3] : memref<8x128xf32, #tpu.memory_space<vmem>>, vector<8x128xf32>
    %c0_4 = arith.constant 0 : index
    %c0_5 = arith.constant 0 : index
    %c0_6 = arith.constant 0 : index
    %5 = vector.load %arg2[%c0_4, %c0_5, %c0_6] : memref<1x1x128xi32, #tpu.memory_space<vmem>>, vector<1x1x128xi32>
    %6 = vector.shape_cast %5 : vector<1x1x128xi32> to vector<1x128xi32>
    %c0_7 = arith.constant 0 : index
    %c0_8 = arith.constant 0 : index
    %c0_9 = arith.constant 0 : index
    %7 = vector.load %arg3[%c0_7, %c0_8, %c0_9] : memref<1x1x128xi32, #tpu.memory_space<vmem>>, vector<1x1x128xi32>
    %8 = vector.shape_cast %7 : vector<1x1x128xi32> to vector<1x128xi32>
    %c0_10 = arith.constant 0 : index
    %c0_11 = arith.constant 0 : index
    %c0_12 = arith.constant 0 : index
    %9 = vector.load %arg4[%c0_10, %c0_11, %c0_12] : memref<1x1x128xi32, #tpu.memory_space<vmem>>, vector<1x1x128xi32>
    %10 = vector.shape_cast %9 : vector<1x1x128xi32> to vector<1x128xi32>
    %11 = tpu.iota {dimensions = array<i32: 0>} : vector<64x128xi32>
    %12 = vector.broadcast %6 : vector<1x128xi32> to vector<64x128xi32>
    %13 = arith.cmpi eq, %11, %12 : vector<64x128xi32>
    %14 = arith.extui %13 : vector<64x128xi1> to vector<64x128xi32>
    %15 = arith.sitofp %14 : vector<64x128xi32> to vector<64x128xf32>
    %cst = arith.constant dense<0.000000e+00> : vector<128x128xf32>
    %16 = tpu.matmul %15, %3, %cst {dimension_numbers = #tpu.dot_dimension_numbers<[0], [0], [1], [1], [0, 1, 1, 1], [], []>} : vector<64x128xf32>, vector<64x128xf32>, vector<128x128xf32> -> vector<128x128xf32>
    %17 = tpu.iota {dimensions = array<i32: 0>} : vector<8x128xi32>
    %18 = vector.broadcast %10 : vector<1x128xi32> to vector<8x128xi32>
    %19 = arith.cmpi eq, %17, %18 : vector<8x128xi32>
    %20 = arith.extui %19 : vector<8x128xi1> to vector<8x128xi32>
    %21 = arith.sitofp %20 : vector<8x128xi32> to vector<8x128xf32>
    %cst_13 = arith.constant dense<0.000000e+00> : vector<128x128xf32>
    %22 = tpu.matmul %21, %4, %cst_13 {dimension_numbers = #tpu.dot_dimension_numbers<[0], [0], [1], [1], [0, 1, 1, 1], [], []>} : vector<8x128xf32>, vector<8x128xf32>, vector<128x128xf32> -> vector<128x128xf32>
    %23 = arith.addf %16, %22 : vector<128x128xf32>
    %cst_14 = arith.constant 0.000000e+00 : f32
    %24 = vector.broadcast %cst_14 : f32 to vector<128x128xf32>
    %25 = arith.maximumf %23, %24 : vector<128x128xf32>
    %c32_i32 = arith.constant 32 : i32
    %26 = arith.muli %arg0, %c32_i32 : i32
    %27 = tpu.iota {dimensions = array<i32: 0>} : vector<32x128xi32>
    %28 = vector.broadcast %26 : i32 to vector<32x128xi32>
    %29 = arith.addi %28, %27 : vector<32x128xi32>
    %30 = vector.broadcast %8 : vector<1x128xi32> to vector<32x128xi32>
    %31 = arith.cmpi eq, %29, %30 : vector<32x128xi32>
    %32 = arith.extui %31 : vector<32x128xi1> to vector<32x128xi32>
    %33 = arith.sitofp %32 : vector<32x128xi32> to vector<32x128xf32>
    %c0_15 = arith.constant 0 : index
    %c0_16 = arith.constant 0 : index
    %34 = vector.load %arg15[%c0_15, %c0_16] : memref<32x128xf32, #tpu.memory_space<vmem>>, vector<32x128xf32>
    %cst_17 = arith.constant dense<0.000000e+00> : vector<32x128xf32>
    %35 = tpu.matmul %33, %25, %cst_17 {dimension_numbers = #tpu.dot_dimension_numbers<[1], [0], [0], [1], [0, 0, 1, 1], [], []>} : vector<32x128xf32>, vector<128x128xf32>, vector<32x128xf32> -> vector<32x128xf32>
    %36 = arith.addf %34, %35 : vector<32x128xf32>
    %c0_18 = arith.constant 0 : index
    %c0_19 = arith.constant 0 : index
    %37 = vector.load %arg15[%c0_18, %c0_19] : memref<32x128xf32, #tpu.memory_space<vmem>>, vector<32x128xf32>
    tpu.vector_store %arg15[%c0_18, %c0_19], %36 {strides = array<i32>} : memref<32x128xf32, #tpu.memory_space<vmem>>, vector<32x128xf32>,
    %c2_i32 = arith.constant 2 : i32
    %38 = arith.cmpi eq, %arg1, %c2_i32 : i32
    %39 = arith.extui %38 : i1 to i32
    %c0_i32_20 = arith.constant 0 : i32
    %40 = arith.cmpi ne, %39, %c0_i32_20 : i32
    scf.if %40 {
      %c32_i32_21 = arith.constant 32 : i32
      %41 = arith.muli %arg0, %c32_i32_21 : i32
      %42 = tpu.assume_multiple %41, 32 : i32
      %43 = arith.index_cast %42 : i32 to index
      %c0_22 = arith.constant 0 : index
      %44 = vector.load %arg5[%43, %c0_22] : memref<64x128xf32, #tpu.memory_space<vmem>>, vector<32x128xf32>
      %c0_23 = arith.constant 0 : index
      %c0_24 = arith.constant 0 : index
      %45 = memref.load %arg13[%c0_23, %c0_24] : memref<1x1xf32, #tpu.memory_space<smem>>
      %cst_25 = arith.constant 1.000000e+00 : f32
      %46 = arith.addf %cst_25, %45 : f32
      %47 = vector.broadcast %46 : f32 to vector<32x128xf32>
      %48 = arith.mulf %47, %44 : vector<32x128xf32>
      %c0_26 = arith.constant 0 : index
      %c0_27 = arith.constant 0 : index
      %49 = vector.load %arg15[%c0_26, %c0_27] : memref<32x128xf32, #tpu.memory_space<vmem>>, vector<32x128xf32>
      %50 = arith.addf %48, %49 : vector<32x128xf32>
      %c0_28 = arith.constant 0 : index
      %c0_29 = arith.constant 0 : index
      %51 = vector.load %arg7[%c0_28, %c0_29] : memref<128x128xf32, #tpu.memory_space<vmem>>, vector<128x128xf32>
      %cst_30 = arith.constant dense<0.000000e+00> : vector<32x128xf32>
      %52 = tpu.matmul %50, %51, %cst_30 {dimension_numbers = #tpu.dot_dimension_numbers<[1], [0], [0], [1], [0, 0, 1, 1], [], []>} : vector<32x128xf32>, vector<128x128xf32>, vector<32x128xf32> -> vector<32x128xf32>
      %c0_31 = arith.constant 0 : index
      %c0_32 = arith.constant 0 : index
      %53 = vector.load %arg8[%c0_31, %c0_32] : memref<1x128xf32, #tpu.memory_space<vmem>>, vector<1x128xf32>
      %54 = vector.broadcast %53 : vector<1x128xf32> to vector<32x128xf32>
      %55 = arith.addf %52, %54 : vector<32x128xf32>
      %56 = tpu.iota {dimensions = array<i32: 1>} : vector<1x128xi32>
      %c32_i32_33 = arith.constant 32 : i32
      %57 = vector.broadcast %c32_i32_33 : i32 to vector<1x128xi32>
      %58 = arith.cmpi slt, %56, %57 : vector<1x128xi32>
      %59 = arith.extui %58 : vector<1x128xi1> to vector<1x128xi32>
      %60 = arith.sitofp %59 : vector<1x128xi32> to vector<1x128xf32>
      %cst_34 = arith.constant dense<0.000000e+00> : vector<32xf32>
      %61 = vector.multi_reduction <add>, %55, %cst_34 [1] : vector<32x128xf32> to vector<32xf32>
      %62 = vector.shape_cast %61 : vector<32xf32> to vector<32x1xf32>
      %cst_35 = arith.constant 3.125000e-02 : f32
      %63 = vector.broadcast %cst_35 : f32 to vector<32x1xf32>
      %64 = arith.mulf %62, %63 : vector<32x1xf32>
      %65 = vector.broadcast %64 : vector<32x1xf32> to vector<32x128xf32>
      %66 = arith.subf %55, %65 : vector<32x128xf32>
      %67 = vector.broadcast %60 : vector<1x128xf32> to vector<32x128xf32>
      %68 = arith.mulf %66, %67 : vector<32x128xf32>
      %69 = arith.mulf %68, %68 : vector<32x128xf32>
      %cst_36 = arith.constant dense<0.000000e+00> : vector<32xf32>
      %70 = vector.multi_reduction <add>, %69, %cst_36 [1] : vector<32x128xf32> to vector<32xf32>
      %71 = vector.shape_cast %70 : vector<32xf32> to vector<32x1xf32>
      %cst_37 = arith.constant 3.125000e-02 : f32
      %72 = vector.broadcast %cst_37 : f32 to vector<32x1xf32>
      %73 = arith.mulf %71, %72 : vector<32x1xf32>
      %cst_38 = arith.constant 9.99999974E-6 : f32
      %74 = vector.broadcast %cst_38 : f32 to vector<32x1xf32>
      %75 = arith.addf %73, %74 : vector<32x1xf32>
      %76 = math.rsqrt %75 : vector<32x1xf32>
      %77 = vector.broadcast %76 : vector<32x1xf32> to vector<32x128xf32>
      %78 = arith.mulf %68, %77 : vector<32x128xf32>
      %c0_39 = arith.constant 0 : index
      %c0_40 = arith.constant 0 : index
      %79 = vector.load %arg9[%c0_39, %c0_40] : memref<1x128xf32, #tpu.memory_space<vmem>>, vector<1x128xf32>
      %80 = vector.broadcast %79 : vector<1x128xf32> to vector<32x128xf32>
      %81 = arith.mulf %78, %80 : vector<32x128xf32>
      %c0_41 = arith.constant 0 : index
      %c0_42 = arith.constant 0 : index
      %82 = vector.load %arg10[%c0_41, %c0_42] : memref<1x128xf32, #tpu.memory_space<vmem>>, vector<1x128xf32>
      %83 = vector.broadcast %82 : vector<1x128xf32> to vector<32x128xf32>
      %84 = arith.addf %81, %83 : vector<32x128xf32>
      %cst_43 = arith.constant 0.000000e+00 : f32
      %85 = vector.broadcast %cst_43 : f32 to vector<32x128xf32>
      %86 = arith.maximumf %84, %85 : vector<32x128xf32>
      %c0_44 = arith.constant 0 : index
      %c0_45 = arith.constant 0 : index
      %87 = vector.load %arg11[%c0_44, %c0_45] : memref<128x128xf32, #tpu.memory_space<vmem>>, vector<128x128xf32>
      %cst_46 = arith.constant dense<0.000000e+00> : vector<32x128xf32>
      %88 = tpu.matmul %86, %87, %cst_46 {dimension_numbers = #tpu.dot_dimension_numbers<[1], [0], [0], [1], [0, 0, 1, 1], [], []>} : vector<32x128xf32>, vector<128x128xf32>, vector<32x128xf32> -> vector<32x128xf32>
      %c0_47 = arith.constant 0 : index
      %c0_48 = arith.constant 0 : index
      %89 = vector.load %arg12[%c0_47, %c0_48] : memref<1x128xf32, #tpu.memory_space<vmem>>, vector<1x128xf32>
      %90 = vector.broadcast %89 : vector<1x128xf32> to vector<32x128xf32>
      %91 = arith.addf %88, %90 : vector<32x128xf32>
      %c0_49 = arith.constant 0 : index
      %c0_50 = arith.constant 0 : index
      %92 = vector.load %arg14[%c0_49, %c0_50] : memref<32x128xf32, #tpu.memory_space<vmem>>, vector<32x128xf32>
      tpu.vector_store %arg14[%c0_49, %c0_50], %91 {strides = array<i32>} : memref<32x128xf32, #tpu.memory_space<vmem>>, vector<32x128xf32>,
    } else {
    }
    return
  }
  func.func @transform_0(%arg0: i32, %arg1: i32) -> (i32, i32, i32) {
    %c0_i32 = arith.constant 0 : i32
    %c0_i32_0 = arith.constant 0 : i32
    %c0_i32_1 = arith.constant 0 : i32
    return %arg1, %c0_i32, %c0_i32_0 : i32, i32, i32
  }
  func.func @transform_1(%arg0: i32, %arg1: i32) -> (i32, i32, i32) {
    %c0_i32 = arith.constant 0 : i32
    %c0_i32_0 = arith.constant 0 : i32
    %c0_i32_1 = arith.constant 0 : i32
    return %arg1, %c0_i32, %c0_i32_0 : i32, i32, i32
  }
  func.func @transform_2(%arg0: i32, %arg1: i32) -> (i32, i32, i32) {
    %c0_i32 = arith.constant 0 : i32
    %c0_i32_0 = arith.constant 0 : i32
    %c0_i32_1 = arith.constant 0 : i32
    return %arg1, %c0_i32, %c0_i32_0 : i32, i32, i32
  }
  func.func @transform_3(%arg0: i32, %arg1: i32) -> (i32, i32) {
    %c0_i32 = arith.constant 0 : i32
    %c0_i32_0 = arith.constant 0 : i32
    %c0_i32_1 = arith.constant 0 : i32
    return %c0_i32, %c0_i32_0 : i32, i32
  }
  func.func @transform_4(%arg0: i32, %arg1: i32) -> (i32, i32) {
    %c0_i32 = arith.constant 0 : i32
    %c0_i32_0 = arith.constant 0 : i32
    %c0_i32_1 = arith.constant 0 : i32
    return %c0_i32, %c0_i32_0 : i32, i32
  }
  func.func @transform_5(%arg0: i32, %arg1: i32) -> (i32, i32) {
    %c0_i32 = arith.constant 0 : i32
    %c0_i32_0 = arith.constant 0 : i32
    %c0_i32_1 = arith.constant 0 : i32
    return %c0_i32, %c0_i32_0 : i32, i32
  }
  func.func @transform_6(%arg0: i32, %arg1: i32) -> (i32, i32) {
    %c0_i32 = arith.constant 0 : i32
    %c0_i32_0 = arith.constant 0 : i32
    %c0_i32_1 = arith.constant 0 : i32
    return %c0_i32, %c0_i32_0 : i32, i32
  }
  func.func @transform_7(%arg0: i32, %arg1: i32) -> (i32, i32) {
    %c0_i32 = arith.constant 0 : i32
    %c0_i32_0 = arith.constant 0 : i32
    %c0_i32_1 = arith.constant 0 : i32
    return %c0_i32, %c0_i32_0 : i32, i32
  }
  func.func @transform_8(%arg0: i32, %arg1: i32) -> (i32, i32) {
    %c0_i32 = arith.constant 0 : i32
    %c0_i32_0 = arith.constant 0 : i32
    %c0_i32_1 = arith.constant 0 : i32
    return %c0_i32, %c0_i32_0 : i32, i32
  }
  func.func @transform_9(%arg0: i32, %arg1: i32) -> (i32, i32) {
    %c0_i32 = arith.constant 0 : i32
    %c0_i32_0 = arith.constant 0 : i32
    %c0_i32_1 = arith.constant 0 : i32
    return %c0_i32, %c0_i32_0 : i32, i32
  }
  func.func @transform_10(%arg0: i32, %arg1: i32) -> (i32, i32) {
    %c0_i32 = arith.constant 0 : i32
    %c0_i32_0 = arith.constant 0 : i32
    %c0_i32_1 = arith.constant 0 : i32
    return %c0_i32, %c0_i32_0 : i32, i32
  }
  func.func @transform_11(%arg0: i32, %arg1: i32) -> (i32, i32) {
    %c0_i32 = arith.constant 0 : i32
    %c0_i32_0 = arith.constant 0 : i32
    %c0_i32_1 = arith.constant 0 : i32
    return %c0_i32, %c0_i32_0 : i32, i32
  }
  func.func @transform_12(%arg0: i32, %arg1: i32) -> (i32, i32) {
    %c0_i32 = arith.constant 0 : i32
    %c0_i32_0 = arith.constant 0 : i32
    return %arg0, %c0_i32 : i32, i32
  }
}

</mosaic_0001>

<llo_original>
// kernel: tpu_custom_call.1
$region0: #{tpu_custom_call.1}
  #allocation0 [shape = 'u32[]', space=smem, size = 0x4, offset = 0x4, fixed_abs, tag = 'smem constant byte address 0x4 - core index']
  #allocation1 [shape = 'u32[72,128]{1,0:T(1,128)}', space=vmem, size = 0x9000, scoped, tag = 'internal scratch']
  #allocation2 [shape = 'f32[32,128]{1,0:T(8,128)}', space=vmem, size = 0x4000, scoped, tag = 'scratch operand']
  #allocation3 [shape = 'f32[1,1]{1,0:T(1,128)S(6)}', space=smem, size = 0x200, scoped, tag = 'scoped memory for tpu_custom_call.1']
  %s0 = inlined_call_operand.hbm [shape: s32[3,1,128], index: 0, kind: input, shape index: {}]
  %s1 = inlined_call_operand.hbm [shape: s32[3,1,128], index: 1, kind: input, shape index: {}]
  %s2 = inlined_call_operand.vmem [shape: s32[3,1,128], index: 2, kind: input, shape index: {}]
  %s3 = inlined_call_operand.hbm [shape: f32[64,128], index: 3, kind: input, shape index: {}]
  %s4 = inlined_call_operand.hbm [shape: f32[8,128], index: 4, kind: input, shape index: {}]
  %s5 = inlined_call_operand.hbm [shape: f32[128,128], index: 5, kind: input, shape index: {}]
  %s6 = inlined_call_operand.vmem [shape: f32[1,128], index: 6, kind: input, shape index: {}]
  %s7 = inlined_call_operand.vmem [shape: f32[1,128], index: 7, kind: input, shape index: {}]
  %s8 = inlined_call_operand.vmem [shape: f32[1,128], index: 8, kind: input, shape index: {}]
  %s9 = inlined_call_operand.hbm [shape: f32[128,128], index: 9, kind: input, shape index: {}]
  %s10 = inlined_call_operand.vmem [shape: f32[1,128], index: 10, kind: input, shape index: {}]
  %s11 = inlined_call_operand.<no memory space> [shape: f32[1,1], index: 11, kind: input, shape index: {}]
  %s12 = inlined_call_operand.hbm [shape: f32[64,128], index: 12, kind: output, shape index: {}]
  %s13 = sld [smem:[#allocation0]]
  $region113: #{tpu_custom_call.1} parent=0
    _
  %s15 = ssub.s32 1, %s13
  %s16 = scalar_select 0, %s15, %s13
  %17 = sst [smem:[#allocation3]] %s11
  $region1: #{tpu_custom_call.1} parent=0
    #allocation4 [shape = 'u8[1024]{0}', space=vmem, size = 0x400, scoped, tag = 'input window, operand 0']
    #allocation5 [shape = 's32[2]{0}', space=sflag, size = 0x8, scoped, tag = 'scoped memory for tpu_custom_call.1']
    #allocation6 [shape = 's32[2]{0}', space=sflag, size = 0x8, scoped, tag = 'scoped memory for tpu_custom_call.1']
    #allocation7 [shape = 'u8[1024]{0}', space=vmem, size = 0x400, scoped, tag = 'input window, operand 1']
    #allocation8 [shape = 's32[2]{0}', space=sflag, size = 0x8, scoped, tag = 'scoped memory for tpu_custom_call.1']
    #allocation9 [shape = 'u8[32768]{0}', space=vmem, size = 0x8000, scoped, tag = 'input window, operand 3, single buffered']
    #allocation10 [shape = 'u8[4096]{0}', space=vmem, size = 0x1000, scoped, tag = 'input window, operand 4, single buffered']
    #allocation11 [shape = 's32[1]{0}', space=sflag, size = 0x4, scoped, tag = 'scoped memory for tpu_custom_call.1']
    #allocation12 [shape = 'u8[65536]{0}', space=vmem, size = 0x10000, scoped, tag = 'input window, operand 5, single buffered']
    #allocation13 [shape = 'u8[65536]{0}', space=vmem, size = 0x10000, scoped, tag = 'input window, operand 9, single buffered']
    #allocation14 [shape = 's32[1]{0}', space=sflag, size = 0x4, scoped, tag = 'scoped memory for tpu_custom_call.1']
    #allocation15 [shape = 'u8[32768]{0}', space=vmem, size = 0x8000, scoped, tag = 'output window, operand 0']
    %18 = vsyncpa [#allocation5], 0
    %s19 = scalar_lea.sflag [#allocation5], 1
    %20 = vsyncpa %s19, 0
    %21 = vsyncpa [#allocation8], 0
    %s22 = scalar_lea.sflag [#allocation8], 1
    %23 = vsyncpa %s22, 0
    %24 = vsyncpa [#allocation11], 0
    %25 = vsyncpa [#allocation14], 0
    %26 = vsyncpa [#allocation6], 0
    %s27 = scalar_lea.sflag [#allocation6], 1
    %28 = vsyncpa %s27, 0
    loop: start=0, step=1, limit=8
    $region2: #{tpu_custom_call.1} parent=1 // loop_pre_header
      _
    $region3: #{tpu_custom_call.1} parent=1 // loop_header
      %s30 = sphi 0, %s34
      %p31 = scmp.ge.s32.totalorder %s30, 8
      %s37 = sphi 0, %s49
      %s38 = sphi 0, %s45
      %s39 = sphi 0, %s37
      %s40 = sphi 0, %s38
      %s41 = sphi 0, %s39
      %s42 = sphi 0, %s40
      %s52 = sphi 0, %s54
      %s55 = sphi 0, %s52
      %s56 = sphi 0, %s55
      %s72 = sphi 0, %s56
      %s78 = sphi 0, %s80
      %s81 = sphi 0, %s78
      %s82 = sphi 0, %s81
      %s98 = sphi 0, %s82
      %s104 = sphi 0, %s106
      %s107 = sphi 0, %s104
      %s108 = sphi 0, %s107
      %s124 = sphi 0, %s108
      %s128 = sphi 0, %s128
      %s130 = sphi 0, %s128
      %s131 = sphi 0, %s130
      %s145 = sphi 0, %s131
      %s149 = sphi 0, %s149
      %s151 = sphi 0, %s149
      %s152 = sphi 0, %s151
      %s166 = sphi 0, %s152
      %s170 = sphi 0, %s170
      %s172 = sphi 0, %s170
      %s173 = sphi 0, %s172
      %s187 = sphi 0, %s173
      %s191 = sphi 0, %s191
      %s193 = sphi 0, %s191
      %s194 = sphi 0, %s193
      %s208 = sphi 0, %s194
      %s212 = sphi 0, %s212
      %s214 = sphi 0, %s212
      %s215 = sphi 0, %s214
      %s229 = sphi 0, %s215
      %s233 = sphi 0, %s233
      %s235 = sphi 0, %s233
      %s236 = sphi 0, %s235
      %s250 = sphi 0, %s236
      %s254 = sphi 0, %s254
      %s256 = sphi 0, %s254
      %s257 = sphi 0, %s256
      %s271 = sphi 0, %s257
      %s275 = sphi 0, %s275
      %s277 = sphi 0, %s275
      %s278 = sphi 0, %s277
      %s292 = sphi 0, %s278
      %s296 = sphi 0, %s296
      %s298 = sphi 0, %s296
      %s299 = sphi 0, %s298
      %s313 = sphi 0, %s299
      %s319 = sphi 0, %s321
      %s322 = sphi 0, %s319
      %s323 = sphi 0, %s322
      %s339 = sphi 0, %s323
    $region4: #{tpu_custom_call.1} parent=1 // loop_header_branch
      %33 = sbr.rel (%p31) target = $region8
    $region5: #{tpu_custom_call.1} parent=1 // loop_body
      %s35 = ssub.s32 %s30, 1
      %s36 = ssub.s32 %s30, 2
      %s43 = sadd.s32 1, %s38
      %p44 = scmp.ge.s32.totalorder %s43, 3
      %s45 = scalar_select %p44, 0, %s43
      %s46 = sadd.s32 1, %s37
      %s47 = scalar_select %p44, %s46, %s37
      %p48 = scmp.ge.s32.totalorder %s47, 2
      %s49 = scalar_select %p48, 0, %s47
      %s50 = ssub.s32 %s38, %s45
      %p51 = scmp.eq.s32.totalorder %s50, 0
      %s53 = sadd.s32 %s52, 1
      %s54 = scalar_select %p51, %s52, %s53
      %p57 = pneg %p51
      %p58 = scmp.eq.s32.totalorder %s30, 5
      %p59 = por %p57, %p58
      %p60 = scmp.ne.s32.totalorder %s52, %s55
      %p61 = scmp.eq.s32.totalorder %s30, 0
      %p62 = por %p60, %p61
      %p63 = scmp.ne.s32.totalorder %s52, %s55
      %p64 = scmp.eq.s32.totalorder %s35, 5
      %p65 = por %p63, %p64
      %p66 = scmp.ne.s32.totalorder %s55, %s56
      %p67 = scmp.eq.s32.totalorder %s35, 0
      %p68 = por %p66, %p67
      %p69 = scmp.ne.s32.totalorder %s55, %s56
      %p70 = scmp.eq.s32.totalorder %s36, 5
      %p71 = por %p69, %p70
      %p73 = scmp.ne.s32.totalorder %s56, %s72
      %p74 = scmp.eq.s32.totalorder %s36, 0
      %p75 = por %p73, %p74
      %s76 = ssub.s32 %s38, %s45
      %p77 = scmp.eq.s32.totalorder %s76, 0
      %s79 = sadd.s32 %s78, 1
      %s80 = scalar_select %p77, %s78, %s79
      %p83 = pneg %p77
      %p84 = scmp.eq.s32.totalorder %s30, 5
      %p85 = por %p83, %p84
      %p86 = scmp.ne.s32.totalorder %s78, %s81
      %p87 = scmp.eq.s32.totalorder %s30, 0
      %p88 = por %p86, %p87
      %p89 = scmp.ne.s32.totalorder %s78, %s81
      %p90 = scmp.eq.s32.totalorder %s35, 5
      %p91 = por %p89, %p90
      %p92 = scmp.ne.s32.totalorder %s81, %s82
      %p93 = scmp.eq.s32.totalorder %s35, 0
      %p94 = por %p92, %p93
      %p95 = scmp.ne.s32.totalorder %s81, %s82
      %p96 = scmp.eq.s32.totalorder %s36, 5
      %p97 = por %p95, %p96
      %p99 = scmp.ne.s32.totalorder %s82, %s98
      %p100 = scmp.eq.s32.totalorder %s36, 0
      %p101 = por %p99, %p100
      %s102 = ssub.s32 %s38, %s45
      %p103 = scmp.eq.s32.totalorder %s102, 0
      %s105 = sadd.s32 %s104, 1
      %s106 = scalar_select %p103, %s104, %s105
      %p109 = pneg %p103
      %p110 = scmp.eq.s32.totalorder %s30, 5
      %p111 = por %p109, %p110
      %p112 = scmp.ne.s32.totalorder %s104, %s107
      %p113 = scmp.eq.s32.totalorder %s30, 0
      %p114 = por %p112, %p113
      %p115 = scmp.ne.s32.totalorder %s104, %s107
      %p116 = scmp.eq.s32.totalorder %s35, 5
      %p117 = por %p115, %p116
      %p118 = scmp.ne.s32.totalorder %s107, %s108
      %p119 = scmp.eq.s32.totalorder %s35, 0
      %p120 = por %p118, %p119
      %p121 = scmp.ne.s32.totalorder %s107, %s108
      %p122 = scmp.eq.s32.totalorder %s36, 5
      %p123 = por %p121, %p122
      %p125 = scmp.ne.s32.totalorder %s108, %s124
      %p126 = scmp.eq.s32.totalorder %s36, 0
      %p127 = por %p125, %p126
      %s129 = sadd.s32 %s128, 1
      %p132 = scmp.eq.s32.totalorder %s30, 5
      %p133 = scmp.ne.s32.totalorder %s128, %s130
      %p134 = scmp.eq.s32.totalorder %s30, 0
      %p135 = por %p133, %p134
      %p136 = scmp.ne.s32.totalorder %s128, %s130
      %p137 = scmp.eq.s32.totalorder %s35, 5
      %p138 = por %p136, %p137
      %p139 = scmp.ne.s32.totalorder %s130, %s131
      %p140 = scmp.eq.s32.totalorder %s35, 0
      %p141 = por %p139, %p140
      %p142 = scmp.ne.s32.totalorder %s130, %s131
      %p143 = scmp.eq.s32.totalorder %s36, 5
      %p144 = por %p142, %p143
      %p146 = scmp.ne.s32.totalorder %s131, %s145
      %p147 = scmp.eq.s32.totalorder %s36, 0
      %p148 = por %p146, %p147
      %s150 = sadd.s32 %s149, 1
      %p153 = scmp.eq.s32.totalorder %s30, 5
      %p154 = scmp.ne.s32.totalorder %s149, %s151
      %p155 = scmp.eq.s32.totalorder %s30, 0
      %p156 = por %p154, %p155
      %p157 = scmp.ne.s32.totalorder %s149, %s151
      %p158 = scmp.eq.s32.totalorder %s35, 5
      %p159 = por %p157, %p158
      %p160 = scmp.ne.s32.totalorder %s151, %s152
      %p161 = scmp.eq.s32.totalorder %s35, 0
      %p162 = por %p160, %p161
      %p163 = scmp.ne.s32.totalorder %s151, %s152
      %p164 = scmp.eq.s32.totalorder %s36, 5
      %p165 = por %p163, %p164
      %p167 = scmp.ne.s32.totalorder %s152, %s166
      %p168 = scmp.eq.s32.totalorder %s36, 0
      %p169 = por %p167, %p168
      %s171 = sadd.s32 %s170, 1
      %p174 = scmp.eq.s32.totalorder %s30, 5
      %p175 = scmp.ne.s32.totalorder %s170, %s172
      %p176 = scmp.eq.s32.totalorder %s30, 0
      %p177 = por %p175, %p176
      %p178 = scmp.ne.s32.totalorder %s170, %s172
      %p179 = scmp.eq.s32.totalorder %s35, 5
      %p180 = por %p178, %p179
      %p181 = scmp.ne.s32.totalorder %s172, %s173
      %p182 = scmp.eq.s32.totalorder %s35, 0
      %p183 = por %p181, %p182
      %p184 = scmp.ne.s32.totalorder %s172, %s173
      %p185 = scmp.eq.s32.totalorder %s36, 5
      %p186 = por %p184, %p185
      %p188 = scmp.ne.s32.totalorder %s173, %s187
      %p189 = scmp.eq.s32.totalorder %s36, 0
      %p190 = por %p188, %p189
      %s192 = sadd.s32 %s191, 1
      %p195 = scmp.eq.s32.totalorder %s30, 5
      %p196 = scmp.ne.s32.totalorder %s191, %s193
      %p197 = scmp.eq.s32.totalorder %s30, 0
      %p198 = por %p196, %p197
      %p199 = scmp.ne.s32.totalorder %s191, %s193
      %p200 = scmp.eq.s32.totalorder %s35, 5
      %p201 = por %p199, %p200
      %p202 = scmp.ne.s32.totalorder %s193, %s194
      %p203 = scmp.eq.s32.totalorder %s35, 0
      %p204 = por %p202, %p203
      %p205 = scmp.ne.s32.totalorder %s193, %s194
      %p206 = scmp.eq.s32.totalorder %s36, 5
      %p207 = por %p205, %p206
      %p209 = scmp.ne.s32.totalorder %s194, %s208
      %p210 = scmp.eq.s32.totalorder %s36, 0
      %p211 = por %p209, %p210
      %s213 = sadd.s32 %s212, 1
      %p216 = scmp.eq.s32.totalorder %s30, 5
      %p217 = scmp.ne.s32.totalorder %s212, %s214
      %p218 = scmp.eq.s32.totalorder %s30, 0
      %p219 = por %p217, %p218
      %p220 = scmp.ne.s32.totalorder %s212, %s214
      %p221 = scmp.eq.s32.totalorder %s35, 5
      %p222 = por %p220, %p221
      %p223 = scmp.ne.s32.totalorder %s214, %s215
      %p224 = scmp.eq.s32.totalorder %s35, 0
      %p225 = por %p223, %p224
      %p226 = scmp.ne.s32.totalorder %s214, %s215
      %p227 = scmp.eq.s32.totalorder %s36, 5
      %p228 = por %p226, %p227
      %p230 = scmp.ne.s32.totalorder %s215, %s229
      %p231 = scmp.eq.s32.totalorder %s36, 0
      %p232 = por %p230, %p231
      %s234 = sadd.s32 %s233, 1
      %p237 = scmp.eq.s32.totalorder %s30, 5
      %p238 = scmp.ne.s32.totalorder %s233, %s235
      %p239 = scmp.eq.s32.totalorder %s30, 0
      %p240 = por %p238, %p239
      %p241 = scmp.ne.s32.totalorder %s233, %s235
      %p242 = scmp.eq.s32.totalorder %s35, 5
      %p243 = por %p241, %p242
      %p244 = scmp.ne.s32.totalorder %s235, %s236
      %p245 = scmp.eq.s32.totalorder %s35, 0
      %p246 = por %p244, %p245
      %p247 = scmp.ne.s32.totalorder %s235, %s236
      %p248 = scmp.eq.s32.totalorder %s36, 5
      %p249 = por %p247, %p248
      %p251 = scmp.ne.s32.totalorder %s236, %s250
      %p252 = scmp.eq.s32.totalorder %s36, 0
      %p253 = por %p251, %p252
      %s255 = sadd.s32 %s254, 1
      %p258 = scmp.eq.s32.totalorder %s30, 5
      %p259 = scmp.ne.s32.totalorder %s254, %s256
      %p260 = scmp.eq.s32.totalorder %s30, 0
      %p261 = por %p259, %p260
      %p262 = scmp.ne.s32.totalorder %s254, %s256
      %p263 = scmp.eq.s32.totalorder %s35, 5
      %p264 = por %p262, %p263
      %p265 = scmp.ne.s32.totalorder %s256, %s257
      %p266 = scmp.eq.s32.totalorder %s35, 0
      %p267 = por %p265, %p266
      %p268 = scmp.ne.s32.totalorder %s256, %s257
      %p269 = scmp.eq.s32.totalorder %s36, 5
      %p270 = por %p268, %p269
      %p272 = scmp.ne.s32.totalorder %s257, %s271
      %p273 = scmp.eq.s32.totalorder %s36, 0
      %p274 = por %p272, %p273
      %s276 = sadd.s32 %s275, 1
      %p279 = scmp.eq.s32.totalorder %s30, 5
      %p280 = scmp.ne.s32.totalorder %s275, %s277
      %p281 = scmp.eq.s32.totalorder %s30, 0
      %p282 = por %p280, %p281
      %p283 = scmp.ne.s32.totalorder %s275, %s277
      %p284 = scmp.eq.s32.totalorder %s35, 5
      %p285 = por %p283, %p284
      %p286 = scmp.ne.s32.totalorder %s277, %s278
      %p287 = scmp.eq.s32.totalorder %s35, 0
      %p288 = por %p286, %p287
      %p289 = scmp.ne.s32.totalorder %s277, %s278
      %p290 = scmp.eq.s32.totalorder %s36, 5
      %p291 = por %p289, %p290
      %p293 = scmp.ne.s32.totalorder %s278, %s292
      %p294 = scmp.eq.s32.totalorder %s36, 0
      %p295 = por %p293, %p294
      %s297 = sadd.s32 %s296, 1
      %p300 = scmp.eq.s32.totalorder %s30, 5
      %p301 = scmp.ne.s32.totalorder %s296, %s298
      %p302 = scmp.eq.s32.totalorder %s30, 0
      %p303 = por %p301, %p302
      %p304 = scmp.ne.s32.totalorder %s296, %s298
      %p305 = scmp.eq.s32.totalorder %s35, 5
      %p306 = por %p304, %p305
      %p307 = scmp.ne.s32.totalorder %s298, %s299
      %p308 = scmp.eq.s32.totalorder %s35, 0
      %p309 = por %p307, %p308
      %p310 = scmp.ne.s32.totalorder %s298, %s299
      %p311 = scmp.eq.s32.totalorder %s36, 5
      %p312 = por %p310, %p311
      %p314 = scmp.ne.s32.totalorder %s299, %s313
      %p315 = scmp.eq.s32.totalorder %s36, 0
      %p316 = por %p314, %p315
      %s317 = ssub.s32 %s37, %s49
      %p318 = scmp.eq.s32.totalorder %s317, 0
      %s320 = sadd.s32 %s319, 1
      %s321 = scalar_select %p318, %s319, %s320
      %p324 = pneg %p318
      %p325 = scmp.eq.s32.totalorder %s30, 5
      %p326 = por %p324, %p325
      %p327 = scmp.ne.s32.totalorder %s319, %s322
      %p328 = scmp.eq.s32.totalorder %s30, 0
      %p329 = por %p327, %p328
      %p330 = scmp.ne.s32.totalorder %s319, %s322
      %p331 = scmp.eq.s32.totalorder %s35, 5
      %p332 = por %p330, %p331
      %p333 = scmp.ne.s32.totalorder %s322, %s323
      %p334 = scmp.eq.s32.totalorder %s35, 0
      %p335 = por %p333, %p334
      %p336 = scmp.ne.s32.totalorder %s322, %s323
      %p337 = scmp.eq.s32.totalorder %s36, 5
      %p338 = por %p336, %p337
      %p340 = scmp.ne.s32.totalorder %s323, %s339
      %p341 = scmp.eq.s32.totalorder %s36, 0
      %p342 = por %p340, %p341
      %p343 = scmp.le.s32.totalorder 1, %s30
      %p344 = scmp.lt.s32.totalorder %s30, 7
      %p345 = pnand %p343, %p344
      %p346 = pneg %p345
      // Predicated region
      $region9: #{tpu_custom_call.1} parent=5 // pred_check
        _
      $region10: #{tpu_custom_call.1} parent=5 // pred_check_branch
        %348 = sbr.rel (%p345) target = $region12
      $region11: #{tpu_custom_call.1} parent=5 // pred_region
        %s349 = ssub.s32 %s30, 1
        // Predicated region
        $region13: #{tpu_custom_call.1} parent=11 // pred_check
          %p350 = pneg %p141
        $region14: #{tpu_custom_call.1} parent=11 // pred_check_branch
          %352 = sbr.rel (%p350) target = $region16
        $region15: #{tpu_custom_call.1} parent=11 // pred_region
          %354 = vsyncadd [#allocation8], 0
          %s355 = sshll.u32 %s3, 4
          %s356 = int_to_ptr.hbm [resolvable:$true] %s355
          %s357 = sshll.u32 [#allocation9], 4
          %s358 = int_to_ptr.vmem [resolvable:$true] %s357
          %363 = dma.hbm_to_vmem [thread:$0]  %s356, 1024, %s358, [#allocation8], 128, 128, 8
        $region16: #{tpu_custom_call.1} parent=11 // pred_fallthru
          _
        // Predicated region
        $region17: #{tpu_custom_call.1} parent=11 // pred_check
          %p364 = pneg %p162
        $region18: #{tpu_custom_call.1} parent=11 // pred_check_branch
          %366 = sbr.rel (%p364) target = $region20
        $region19: #{tpu_custom_call.1} parent=11 // pred_region
          %368 = vsyncadd [#allocation11], 0
          %s370 = sshll.u32 %s4, 4
          %s371 = int_to_ptr.hbm [resolvable:$true] %s370
          %s372 = sshll.u32 [#allocation10], 4
          %s373 = int_to_ptr.vmem [resolvable:$true] %s372
          %375 = dma.hbm_to_vmem [thread:$0]  %s371, 128, %s373, [#allocation11]
        $region20: #{tpu_custom_call.1} parent=11 // pred_fallthru
          _
        // Predicated region
        $region21: #{tpu_custom_call.1} parent=11 // pred_check
          %p376 = pneg %p183
        $region22: #{tpu_custom_call.1} parent=11 // pred_check_branch
          %378 = sbr.rel (%p376) target = $region24
        $region23: #{tpu_custom_call.1} parent=11 // pred_region
          %380 = vsyncadd [#allocation11], 0
          %s381 = sshll.u32 %s5, 4
          %s382 = int_to_ptr.hbm [resolvable:$true] %s381
          %s383 = sshll.u32 [#allocation12], 4
          %s384 = int_to_ptr.vmem [resolvable:$true] %s383
          %389 = dma.hbm_to_vmem [thread:$0]  %s382, 2048, %s384, [#allocation11], 128, 128, 8
        $region24: #{tpu_custom_call.1} parent=11 // pred_fallthru
          _
        // Predicated region
        $region25: #{tpu_custom_call.1} parent=11 // pred_check
          %p390 = pneg %p204
        $region26: #{tpu_custom_call.1} parent=11 // pred_check_branch
          %392 = sbr.rel (%p390) target = $region28
        $region27: #{tpu_custom_call.1} parent=11 // pred_region
          _
        $region28: #{tpu_custom_call.1} parent=11 // pred_fallthru
          _
        // Predicated region
        $region29: #{tpu_custom_call.1} parent=11 // pred_check
          %p393 = pneg %p225
        $region30: #{tpu_custom_call.1} parent=11 // pred_check_branch
          %395 = sbr.rel (%p393) target = $region32
        $region31: #{tpu_custom_call.1} parent=11 // pred_region
          _
        $region32: #{tpu_custom_call.1} parent=11 // pred_fallthru
          _
        // Predicated region
        $region33: #{tpu_custom_call.1} parent=11 // pred_check
          %p396 = pneg %p246
        $region34: #{tpu_custom_call.1} parent=11 // pred_check_branch
          %398 = sbr.rel (%p396) target = $region36
        $region35: #{tpu_custom_call.1} parent=11 // pred_region
          _
        $region36: #{tpu_custom_call.1} parent=11 // pred_fallthru
          _
        // Predicated region
        $region37: #{tpu_custom_call.1} parent=11 // pred_check
          %p399 = pneg %p267
        $region38: #{tpu_custom_call.1} parent=11 // pred_check_branch
          %401 = sbr.rel (%p399) target = $region40
        $region39: #{tpu_custom_call.1} parent=11 // pred_region
          %403 = vsyncadd [#allocation14], 0
          %s404 = sshll.u32 %s9, 4
          %s405 = int_to_ptr.hbm [resolvable:$true] %s404
          %s406 = sshll.u32 [#allocation13], 4
          %s407 = int_to_ptr.vmem [resolvable:$true] %s406
          %412 = dma.hbm_to_vmem [thread:$0]  %s405, 2048, %s407, [#allocation14], 128, 128, 8
        $region40: #{tpu_custom_call.1} parent=11 // pred_fallthru
          _
        // Predicated region
        $region41: #{tpu_custom_call.1} parent=11 // pred_check
          %p413 = pneg %p288
        $region42: #{tpu_custom_call.1} parent=11 // pred_check_branch
          %415 = sbr.rel (%p413) target = $region44
        $region43: #{tpu_custom_call.1} parent=11 // pred_region
          _
        $region44: #{tpu_custom_call.1} parent=11 // pred_fallthru
          _
        // Predicated region
        $region45: #{tpu_custom_call.1} parent=11 // pred_check
          %p416 = pneg %p309
        $region46: #{tpu_custom_call.1} parent=11 // pred_check_branch
          %418 = sbr.rel (%p416) target = $region48
        $region47: #{tpu_custom_call.1} parent=11 // pred_region
          _
        $region48: #{tpu_custom_call.1} parent=11 // pred_fallthru
          _
      $region12: #{tpu_custom_call.1} parent=5 // pred_fallthru
        _
      %p419 = scmp.lt.s32.totalorder %s30, 6
      // Predicated region
      $region49: #{tpu_custom_call.1} parent=5 // pred_check
        %p420 = pneg %p419
      $region50: #{tpu_custom_call.1} parent=5 // pred_check_branch
        %422 = sbr.rel (%p420) target = $region52
      $region51: #{tpu_custom_call.1} parent=5 // pred_region
        // Predicated region
        $region53: #{tpu_custom_call.1} parent=51 // pred_check
          %p423 = pneg %p62
        $region54: #{tpu_custom_call.1} parent=51 // pred_check_branch
          %425 = sbr.rel (%p423) target = $region56
        $region55: #{tpu_custom_call.1} parent=51 // pred_region
          %s426 = sand.u32 %s52, 1
          %s427 = scalar_lea.sflag [#allocation5], %s426
          %s428 = sand.u32 %s52, 1
          %s429 = scalar_lea.vmem [#allocation4], %s428
          %431 = vsyncadd %s427, 0
          %s432 = scalar_lea.hbm %s0, %s38
          %s434 = sshll.u32 %s432, 4
          %s435 = int_to_ptr.hbm [resolvable:$true] %s434
          %s436 = sshll.u32 %s429, 4
          %s437 = int_to_ptr.vmem [resolvable:$true] %s436
          %439 = dma.hbm_to_vmem [thread:$0]  %s435, 16, %s437, %s427
        $region56: #{tpu_custom_call.1} parent=51 // pred_fallthru
          _
        // Predicated region
        $region57: #{tpu_custom_call.1} parent=51 // pred_check
          %p440 = pneg %p88
        $region58: #{tpu_custom_call.1} parent=51 // pred_check_branch
          %442 = sbr.rel (%p440) target = $region60
        $region59: #{tpu_custom_call.1} parent=51 // pred_region
          %s443 = sand.u32 %s30, 1
          %s444 = scalar_lea.sflag [#allocation8], %s443
          %s445 = sand.u32 %s78, 1
          %s446 = scalar_lea.vmem [#allocation7], %s445
          %448 = vsyncadd %s444, 0
          %s449 = scalar_lea.hbm %s1, %s38
          %s451 = sshll.u32 %s449, 4
          %s452 = int_to_ptr.hbm [resolvable:$true] %s451
          %s453 = sshll.u32 %s446, 4
          %s454 = int_to_ptr.vmem [resolvable:$true] %s453
          %456 = dma.hbm_to_vmem [thread:$0]  %s452, 16, %s454, %s444
        $region60: #{tpu_custom_call.1} parent=51 // pred_fallthru
          _
        // Predicated region
        $region61: #{tpu_custom_call.1} parent=51 // pred_check
          %p457 = pneg %p114
        $region62: #{tpu_custom_call.1} parent=51 // pred_check_branch
          %459 = sbr.rel (%p457) target = $region64
        $region63: #{tpu_custom_call.1} parent=51 // pred_region
          %p460 = scmp.lt.s32.totalorder %s38, 2
          %s461 = scalar_select %p460, %s38, 2
          %s462 = scalar_lea.vmem %s2, %s461
        $region64: #{tpu_custom_call.1} parent=51 // pred_fallthru
          _
      $region52: #{tpu_custom_call.1} parent=5 // pred_fallthru
        _
      %p463 = scmp.le.s32.totalorder 1, %s30
      %p464 = scmp.lt.s32.totalorder %s30, 7
      %p465 = pnand %p463, %p464
      %p466 = pneg %p465
      // Predicated region
      $region65: #{tpu_custom_call.1} parent=5 // pred_check
        _
      $region66: #{tpu_custom_call.1} parent=5 // pred_check_branch
        %468 = sbr.rel (%p465) target = $region68
      $region67: #{tpu_custom_call.1} parent=5 // pred_region
        %s469 = ssub.s32 %s30, 1
        %s470 = sand.u32 %s55, 1
        %s471 = scalar_lea.sflag [#allocation5], %s470
        %s472 = sand.u32 %s55, 1
        %s473 = scalar_lea.vmem [#allocation4], %s472
        // Predicated region
        $region69: #{tpu_custom_call.1} parent=67 // pred_check
          %p474 = pneg %p68
        $region70: #{tpu_custom_call.1} parent=67 // pred_check_branch
          %476 = sbr.rel (%p474) target = $region72
        $region71: #{tpu_custom_call.1} parent=67 // pred_region
          %478 = dma.done %s471, 16
        $region72: #{tpu_custom_call.1} parent=67 // pred_fallthru
          _
        %s479 = sand.u32 %s35, 1
        %s480 = scalar_lea.sflag [#allocation8], %s479
        %s481 = sand.u32 %s81, 1
        %s482 = scalar_lea.vmem [#allocation7], %s481
        // Predicated region
        $region73: #{tpu_custom_call.1} parent=67 // pred_check
          %p483 = pneg %p94
        $region74: #{tpu_custom_call.1} parent=67 // pred_check_branch
          %485 = sbr.rel (%p483) target = $region76
        $region75: #{tpu_custom_call.1} parent=67 // pred_region
          %487 = dma.done %s480, 16
        $region76: #{tpu_custom_call.1} parent=67 // pred_fallthru
          _
        // Predicated region
        $region77: #{tpu_custom_call.1} parent=67 // pred_check
          %p488 = pneg %p141
        $region78: #{tpu_custom_call.1} parent=67 // pred_check_branch
          %490 = sbr.rel (%p488) target = $region80
        $region79: #{tpu_custom_call.1} parent=67 // pred_region
          %492 = dma.done [#allocation8], 1024
        $region80: #{tpu_custom_call.1} parent=67 // pred_fallthru
          _
        // Predicated region
        $region81: #{tpu_custom_call.1} parent=67 // pred_check
          %p493 = pneg %p162
        $region82: #{tpu_custom_call.1} parent=67 // pred_check_branch
          %495 = sbr.rel (%p493) target = $region84
        $region83: #{tpu_custom_call.1} parent=67 // pred_region
          %497 = dma.done [#allocation11], 128
        $region84: #{tpu_custom_call.1} parent=67 // pred_fallthru
          _
        // Predicated region
        $region85: #{tpu_custom_call.1} parent=67 // pred_check
          %p498 = pneg %p183
        $region86: #{tpu_custom_call.1} parent=67 // pred_check_branch
          %500 = sbr.rel (%p498) target = $region88
        $region87: #{tpu_custom_call.1} parent=67 // pred_region
          %502 = dma.done [#allocation11], 2048
        $region88: #{tpu_custom_call.1} parent=67 // pred_fallthru
          _
        // Predicated region
        $region89: #{tpu_custom_call.1} parent=67 // pred_check
          %p503 = pneg %p267
        $region90: #{tpu_custom_call.1} parent=67 // pred_check_branch
          %505 = sbr.rel (%p503) target = $region92
        $region91: #{tpu_custom_call.1} parent=67 // pred_region
          %507 = dma.done [#allocation14], 2048
        $region92: #{tpu_custom_call.1} parent=67 // pred_fallthru
          _
        %s508 = sand.u32 %s55, 1
        %s509 = scalar_lea.sflag [#allocation5], %s508
        %s510 = sand.u32 %s55, 1
        %s511 = scalar_lea.vmem [#allocation4], %s510
        %p512 = pneg %p68
        %p513 = pneg %p65
        %s514 = sand.u32 %s35, 1
        %s515 = scalar_lea.sflag [#allocation8], %s514
        %s516 = sand.u32 %s81, 1
        %s517 = scalar_lea.vmem [#allocation7], %s516
        %p518 = pneg %p94
        %p519 = pneg %p91
        %p520 = scmp.lt.s32.totalorder %s40, 2
        %s521 = scalar_select %p520, %s40, 2
        %s522 = scalar_lea.vmem %s2, %s521
        %p523 = pneg %p120
        %p524 = pneg %p117
        %p525 = pneg %p141
        %p526 = pneg %p138
        %p527 = pneg %p162
        %p528 = pneg %p159
        %p529 = pneg %p183
        %p530 = pneg %p180
        %p531 = pneg %p204
        %p532 = pneg %p201
        %p533 = pneg %p225
        %p534 = pneg %p222
        %p535 = pneg %p246
        %p536 = pneg %p243
        %p537 = pneg %p267
        %p538 = pneg %p264
        %p539 = pneg %p288
        %p540 = pneg %p285
        %p541 = pneg %p309
        %p542 = pneg %p306
        %p543 = pneg %p335
        %p544 = pneg %p332
        %s545 = sand.u32 %s322, 1
        %s546 = scalar_lea.sflag [#allocation6], %s545
        %s547 = sand.u32 %s322, 1
        %s548 = smul.addr %s547, 32
        %s549 = scalar_lea.vmem [#allocation15], %s548
        %p550 = scmp.lt.s32.totalorder %s40, 2
        %s551 = scalar_select %p550, %s40, 2
        %s552 = scalar_lea.vmem %s2, %s551
        %s553 = smul.u32 4, %s39
        %p554 = scmp.eq.s32.totalorder %s40, 0
        // Predicated region
        $region93: #{tpu_custom_call.1} parent=67 // pred_check
          %p555 = pneg %p554
        $region94: #{tpu_custom_call.1} parent=67 // pred_check_branch
          %557 = sbr.rel (%p555) target = $region96
        $region95: #{tpu_custom_call.1} parent=67 // pred_region
          %558 = vst [vmem:[#allocation2] sm:$0xff] 0.0
          %559 = vst [vmem:[#allocation2 + $0x8] sm:$0xff] 0.0
          %560 = vst [vmem:[#allocation2 + $0x10] sm:$0xff] 0.0
          %561 = vst [vmem:[#allocation2 + $0x18] sm:$0xff] 0.0
        $region96: #{tpu_custom_call.1} parent=67 // pred_fallthru
          _
        %v562 = vld [vmem:[#allocation9] sm:$0xff]
        %v563 = vld [vmem:[#allocation9 + $0x8] sm:$0xff]
        %v564 = vld [vmem:[#allocation9 + $0x10] sm:$0xff]
        %v565 = vld [vmem:[#allocation9 + $0x18] sm:$0xff]
        %v566 = vld [vmem:[#allocation9 + $0x20] sm:$0xff]
        %v567 = vld [vmem:[#allocation9 + $0x28] sm:$0xff]
        %v568 = vld [vmem:[#allocation9 + $0x30] sm:$0xff]
        %v569 = vld [vmem:[#allocation9 + $0x38] sm:$0xff]
        %v570 = vld [vmem:[#allocation10] sm:$0xff]
        %v571 = vld [vmem:[%s473] sm:$0x1]
        %v572 = vld [vmem:[%s482] sm:$0x1]
        %v573 = vld [vmem:[%s552] sm:$0x1]
        %v574 = vlaneseq
        %v575 = vshrl.u32 %v574, 7
        %v576 = vadd.s32 %v575, 8
        %v577 = vadd.s32 %v575, 16
        %v578 = vadd.s32 %v575, 24
        %v579 = vadd.s32 %v575, 32
        %v580 = vadd.s32 %v575, 40
        %v581 = vadd.s32 %v575, 48
        %v582 = vadd.s32 %v575, 56
        %v583 = vperm.slane %v571, 0
        %vm584 = vcmp.eq.s32.totalorder %v575, %v583
        %vm585 = vcmp.eq.s32.totalorder %v576, %v583
        %vm586 = vcmp.eq.s32.totalorder %v577, %v583
        %vm587 = vcmp.eq.s32.totalorder %v578, %v583
        %vm588 = vcmp.eq.s32.totalorder %v579, %v583
        %vm589 = vcmp.eq.s32.totalorder %v580, %v583
        %vm590 = vcmp.eq.s32.totalorder %v581, %v583
        %vm591 = vcmp.eq.s32.totalorder %v582, %v583
        %v592 = vsel %vm584, 1, 0
        %v593 = vsel %vm585, 1, 0
        %v594 = vsel %vm586, 1, 0
        %v595 = vsel %vm587, 1, 0
        %v596 = vsel %vm588, 1, 0
        %v597 = vsel %vm589, 1, 0
        %v598 = vsel %vm590, 1, 0
        %v599 = vsel %vm591, 1, 0
        %v600 = vcvt.s32.f32 %v592
        %v601 = vcvt.s32.f32 %v593
        %v602 = vcvt.s32.f32 %v594
        %v603 = vcvt.s32.f32 %v595
        %v604 = vcvt.s32.f32 %v596
        %v605 = vcvt.s32.f32 %v597
        %v606 = vcvt.s32.f32 %v598
        %v607 = vcvt.s32.f32 %v599
        %v608 = vperm.slane %v573, 0
        %vm609 = vcmp.eq.s32.totalorder %v575, %v608
        %v610 = vsel %vm609, 1, 0
        %v611 = vcvt.s32.f32 %v610
        %612 = vxpose.xlu0.b32.start [1/16] %v611, 128
        %613 = vxpose.xlu0.b32.cont [2/16] 0.0, 128
        %614 = vxpose.xlu0.b32.cont [3/16] 0.0, 128
        %615 = vxpose.xlu0.b32.cont [4/16] 0.0, 128
        %616 = vxpose.xlu0.b32.cont [5/16] 0.0, 128
        %617 = vxpose.xlu0.b32.cont [6/16] 0.0, 128
        %618 = vxpose.xlu0.b32.cont [7/16] 0.0, 128
        %619 = vxpose.xlu0.b32.cont [8/16] 0.0, 128
        %620 = vxpose.xlu0.b32.cont [9/16] 0.0, 128
        %621 = vxpose.xlu0.b32.cont [10/16] 0.0, 128
        %622 = vxpose.xlu0.b32.cont [11/16] 0.0, 128
        %623 = vxpose.xlu0.b32.cont [12/16] 0.0, 128
        %624 = vxpose.xlu0.b32.cont [13/16] 0.0, 128
        %625 = vxpose.xlu0.b32.cont [14/16] 0.0, 128
        %626 = vxpose.xlu0.b32.cont [15/16] 0.0, 128
        %627 = vxpose.xlu0.b32.end [16/16] 0.0, 128
        %v628 = vpop.trf.xlu0
        %v629 = vpop.trf.xlu0
        %v630 = vpop.trf.xlu0
        %v631 = vpop.trf.xlu0
        %v632 = vpop.trf.xlu0
        %v633 = vpop.trf.xlu0
        %v634 = vpop.trf.xlu0
        %v635 = vpop.trf.xlu0
        %v636 = vpop.trf.xlu0
        %v637 = vpop.trf.xlu0
        %v638 = vpop.trf.xlu0
        %v639 = vpop.trf.xlu0
        %v640 = vpop.trf.xlu0
        %v641 = vpop.trf.xlu0
        %v642 = vpop.trf.xlu0
        %v643 = vpop.trf.xlu0
        %vm644 = vcmask 64512
        %v646 = vsel %vm644, %v628, 0
        %v649 = vsel %vm644, %v629, 0
        %v652 = vsel %vm644, %v630, 0
        %v655 = vsel %vm644, %v631, 0
        %v658 = vsel %vm644, %v632, 0
        %v661 = vsel %vm644, %v633, 0
        %v664 = vsel %vm644, %v634, 0
        %v667 = vsel %vm644, %v635, 0
        %v670 = vsel %vm644, %v636, 0
        %v673 = vsel %vm644, %v637, 0
        %v676 = vsel %vm644, %v638, 0
        %v679 = vsel %vm644, %v639, 0
        %v682 = vsel %vm644, %v640, 0
        %v685 = vsel %vm644, %v641, 0
        %v688 = vsel %vm644, %v642, 0
        %v691 = vsel %vm644, %v643, 0
        %693 = vmatpush.msra.mxu0 0.0
        %694 = vmatpush.msra.mxu0 0.0
        %695 = vmatpush.msra.mxu0 0.0
        %696 = vmatpush.msra.mxu0 0.0
        %697 = vmatpush.msra.mxu0 0.0
        %698 = vmatpush.msra.mxu0 0.0
        %699 = vmatpush.msra.mxu0 0.0
        %700 = vmatpush.msra.mxu0 0.0
        %701 = vmatpush.msra.mxu0 0.0
        %702 = vmatpush.msra.mxu0 0.0
        %703 = vmatpush.msra.mxu0 0.0
        %704 = vmatpush.msra.mxu0 0.0
        %705 = vmatpush.msra.mxu0 0.0
        %706 = vmatpush.msra.mxu0 0.0
        %707 = vmatpush.msra.mxu0 0.0
        %708 = vmatpush.msra.mxu0 %v570
        %709 = vmatmul.f32.gmra.mxu0 %v646
        %v710 = vpop.f32.mrf.mxu0
        %v711 = vadd.f32 0.0, %v710
        %712 = vmatmul.f32.gmra.mxu0 %v649
        %v713 = vpop.f32.mrf.mxu0
        %v714 = vadd.f32 0.0, %v713
        %715 = vmatmul.f32.gmra.mxu0 %v652
        %v716 = vpop.f32.mrf.mxu0
        %v717 = vadd.f32 0.0, %v716
        %718 = vmatmul.f32.gmra.mxu0 %v655
        %v719 = vpop.f32.mrf.mxu0
        %v720 = vadd.f32 0.0, %v719
        %721 = vmatmul.f32.gmra.mxu0 %v658
        %v722 = vpop.f32.mrf.mxu0
        %v723 = vadd.f32 0.0, %v722
        %724 = vmatmul.f32.gmra.mxu0 %v661
        %v725 = vpop.f32.mrf.mxu0
        %v726 = vadd.f32 0.0, %v725
        %727 = vmatmul.f32.gmra.mxu0 %v664
        %v728 = vpop.f32.mrf.mxu0
        %v729 = vadd.f32 0.0, %v728
        %730 = vmatmul.f32.gmra.mxu0 %v667
        %v731 = vpop.f32.mrf.mxu0
        %v732 = vadd.f32 0.0, %v731
        %733 = vmatmul.f32.gmra.mxu0 %v670
        %v734 = vpop.f32.mrf.mxu0
        %v735 = vadd.f32 0.0, %v734
        %736 = vmatmul.f32.gmra.mxu0 %v673
        %v737 = vpop.f32.mrf.mxu0
        %v738 = vadd.f32 0.0, %v737
        %739 = vmatmul.f32.gmra.mxu0 %v676
        %v740 = vpop.f32.mrf.mxu0
        %v741 = vadd.f32 0.0, %v740
        %742 = vmatmul.f32.gmra.mxu0 %v679
        %v743 = vpop.f32.mrf.mxu0
        %v744 = vadd.f32 0.0, %v743
        %745 = vmatmul.f32.gmra.mxu0 %v682
        %v746 = vpop.f32.mrf.mxu0
        %v747 = vadd.f32 0.0, %v746
        %748 = vmatmul.f32.gmra.mxu0 %v685
        %v749 = vpop.f32.mrf.mxu0
        %v750 = vadd.f32 0.0, %v749
        %751 = vmatmul.f32.gmra.mxu0 %v688
        %v752 = vpop.f32.mrf.mxu0
        %v753 = vadd.f32 0.0, %v752
        %754 = vmatmul.f32.gmra.mxu0 %v691
        %v755 = vpop.f32.mrf.mxu0
        %v756 = vadd.f32 0.0, %v755
        %757 = vdwg.mxu0
        %758 = vxpose.xlu0.b32.start [1/16] %v600, 128
        %759 = vxpose.xlu0.b32.cont [2/16] %v601, 128
        %760 = vxpose.xlu0.b32.cont [3/16] %v602, 128
        %761 = vxpose.xlu0.b32.cont [4/16] %v603, 128
        %762 = vxpose.xlu0.b32.cont [5/16] %v604, 128
        %763 = vxpose.xlu0.b32.cont [6/16] %v605, 128
        %764 = vxpose.xlu0.b32.cont [7/16] %v606, 128
        %765 = vxpose.xlu0.b32.cont [8/16] %v607, 128
        %766 = vxpose.xlu0.b32.cont [9/16] 0.0, 128
        %767 = vxpose.xlu0.b32.cont [10/16] 0.0, 128
        %768 = vxpose.xlu0.b32.cont [11/16] 0.0, 128
        %769 = vxpose.xlu0.b32.cont [12/16] 0.0, 128
        %770 = vxpose.xlu0.b32.cont [13/16] 0.0, 128
        %771 = vxpose.xlu0.b32.cont [14/16] 0.0, 128
        %772 = vxpose.xlu0.b32.cont [15/16] 0.0, 128
        %773 = vxpose.xlu0.b32.end [16/16] 0.0, 128
        %v774 = vpop.trf.xlu0
        %v775 = vpop.trf.xlu0
        %v776 = vpop.trf.xlu0
        %v777 = vpop.trf.xlu0
        %v778 = vpop.trf.xlu0
        %v779 = vpop.trf.xlu0
        %v780 = vpop.trf.xlu0
        %v781 = vpop.trf.xlu0
        %v782 = vpop.trf.xlu0
        %v783 = vpop.trf.xlu0
        %v784 = vpop.trf.xlu0
        %v785 = vpop.trf.xlu0
        %v786 = vpop.trf.xlu0
        %v787 = vpop.trf.xlu0
        %v788 = vpop.trf.xlu0
        %v789 = vpop.trf.xlu0
        %vm790 = vcmask 523264
        %v792 = vsel %vm790, %v774, 0
        %v795 = vsel %vm790, %v775, 0
        %v798 = vsel %vm790, %v776, 0
        %v801 = vsel %vm790, %v777, 0
        %v804 = vsel %vm790, %v778, 0
        %v807 = vsel %vm790, %v779, 0
        %v810 = vsel %vm790, %v780, 0
        %v813 = vsel %vm790, %v781, 0
        %v816 = vsel %vm790, %v782, 0
        %v819 = vsel %vm790, %v783, 0
        %v822 = vsel %vm790, %v784, 0
        %v825 = vsel %vm790, %v785, 0
        %v828 = vsel %vm790, %v786, 0
        %v831 = vsel %vm790, %v787, 0
        %v834 = vsel %vm790, %v788, 0
        %v837 = vsel %vm790, %v789, 0
        %839 = vmatpush.msra.mxu0 0.0
        %840 = vmatpush.msra.mxu0 0.0
        %841 = vmatpush.msra.mxu0 0.0
        %842 = vmatpush.msra.mxu0 0.0
        %843 = vmatpush.msra.mxu0 0.0
        %844 = vmatpush.msra.mxu0 0.0
        %845 = vmatpush.msra.mxu0 0.0
        %846 = vmatpush.msra.mxu0 0.0
        %847 = vmatpush.msra.mxu0 %v569
        %848 = vmatpush.msra.mxu0 %v568
        %849 = vmatpush.msra.mxu0 %v567
        %850 = vmatpush.msra.mxu0 %v566
        %851 = vmatpush.msra.mxu0 %v565
        %852 = vmatpush.msra.mxu0 %v564
        %853 = vmatpush.msra.mxu0 %v563
        %854 = vmatpush.msra.mxu0 %v562
        %855 = vmatmul.f32.gmra.mxu0 %v792
        %v856 = vpop.f32.mrf.mxu0
        %v857 = vadd.f32 %v711, %v856
        %858 = vmatmul.f32.gmra.mxu0 %v795
        %v859 = vpop.f32.mrf.mxu0
        %v860 = vadd.f32 %v714, %v859
        %861 = vmatmul.f32.gmra.mxu0 %v798
        %v862 = vpop.f32.mrf.mxu0
        %v863 = vadd.f32 %v717, %v862
        %864 = vmatmul.f32.gmra.mxu0 %v801
        %v865 = vpop.f32.mrf.mxu0
        %v866 = vadd.f32 %v720, %v865
        %867 = vmatmul.f32.gmra.mxu0 %v804
        %v868 = vpop.f32.mrf.mxu0
        %v869 = vadd.f32 %v723, %v868
        %870 = vmatmul.f32.gmra.mxu0 %v807
        %v871 = vpop.f32.mrf.mxu0
        %v872 = vadd.f32 %v726, %v871
        %873 = vmatmul.f32.gmra.mxu0 %v810
        %v874 = vpop.f32.mrf.mxu0
        %v875 = vadd.f32 %v729, %v874
        %876 = vmatmul.f32.gmra.mxu0 %v813
        %v877 = vpop.f32.mrf.mxu0
        %v878 = vadd.f32 %v732, %v877
        %879 = vmatmul.f32.gmra.mxu0 %v816
        %v880 = vpop.f32.mrf.mxu0
        %v881 = vadd.f32 %v735, %v880
        %882 = vmatmul.f32.gmra.mxu0 %v819
        %v883 = vpop.f32.mrf.mxu0
        %v884 = vadd.f32 %v738, %v883
        %885 = vmatmul.f32.gmra.mxu0 %v822
        %v886 = vpop.f32.mrf.mxu0
        %v887 = vadd.f32 %v741, %v886
        %888 = vmatmul.f32.gmra.mxu0 %v825
        %v889 = vpop.f32.mrf.mxu0
        %v890 = vadd.f32 %v744, %v889
        %891 = vmatmul.f32.gmra.mxu0 %v828
        %v892 = vpop.f32.mrf.mxu0
        %v893 = vadd.f32 %v747, %v892
        %894 = vmatmul.f32.gmra.mxu0 %v831
        %v895 = vpop.f32.mrf.mxu0
        %v896 = vadd.f32 %v750, %v895
        %897 = vmatmul.f32.gmra.mxu0 %v834
        %v898 = vpop.f32.mrf.mxu0
        %v899 = vadd.f32 %v753, %v898
        %900 = vmatmul.f32.gmra.mxu0 %v837
        %v901 = vpop.f32.mrf.mxu0
        %v902 = vadd.f32 %v756, %v901
        %903 = vdwg.mxu0
        %v904 = vmax.f32 %v857, 0.0
        %v905 = vmax.f32 %v860, 0.0
        %v906 = vmax.f32 %v863, 0.0
        %v907 = vmax.f32 %v866, 0.0
        %v908 = vmax.f32 %v869, 0.0
        %v909 = vmax.f32 %v872, 0.0
        %v910 = vmax.f32 %v875, 0.0
        %v911 = vmax.f32 %v878, 0.0
        %v912 = vmax.f32 %v881, 0.0
        %v913 = vmax.f32 %v884, 0.0
        %v914 = vmax.f32 %v887, 0.0
        %v915 = vmax.f32 %v890, 0.0
        %v916 = vmax.f32 %v893, 0.0
        %v917 = vmax.f32 %v896, 0.0
        %v918 = vmax.f32 %v899, 0.0
        %v919 = vmax.f32 %v902, 0.0
        %s920 = smul.u32 %s39, 32
        %v921 = vstv %s920
        %v922 = vadd.s32 %v921, %v575
        %v923 = vadd.s32 %v921, %v576
        %v924 = vadd.s32 %v921, %v577
        %v925 = vadd.s32 %v921, %v578
        %v926 = vperm.slane %v572, 0
        %vm927 = vcmp.eq.s32.totalorder %v922, %v926
        %vm928 = vcmp.eq.s32.totalorder %v923, %v926
        %vm929 = vcmp.eq.s32.totalorder %v924, %v926
        %vm930 = vcmp.eq.s32.totalorder %v925, %v926
        %v931 = vsel %vm927, 1, 0
        %v932 = vsel %vm928, 1, 0
        %v933 = vsel %vm929, 1, 0
        %v934 = vsel %vm930, 1, 0
        %v935 = vcvt.s32.f32 %v931
        %v936 = vcvt.s32.f32 %v932
        %v937 = vcvt.s32.f32 %v933
        %v938 = vcvt.s32.f32 %v934
        %v939 = vld [vmem:[#allocation2] sm:$0xff]
        %v940 = vld [vmem:[#allocation2 + $0x8] sm:$0xff]
        %v941 = vld [vmem:[#allocation2 + $0x10] sm:$0xff]
        %v942 = vld [vmem:[#allocation2 + $0x18] sm:$0xff]
        %943 = vmatpush.msra.mxu0 %v919
        %944 = vmatpush.msra.mxu0 %v918
        %945 = vmatpush.msra.mxu0 %v917
        %946 = vmatpush.msra.mxu0 %v916
        %947 = vmatpush.msra.mxu0 %v915
        %948 = vmatpush.msra.mxu0 %v914
        %949 = vmatpush.msra.mxu0 %v913
        %950 = vmatpush.msra.mxu0 %v912
        %951 = vmatpush.msra.mxu0 %v911
        %952 = vmatpush.msra.mxu0 %v910
        %953 = vmatpush.msra.mxu0 %v909
        %954 = vmatpush.msra.mxu0 %v908
        %955 = vmatpush.msra.mxu0 %v907
        %956 = vmatpush.msra.mxu0 %v906
        %957 = vmatpush.msra.mxu0 %v905
        %958 = vmatpush.msra.mxu0 %v904
        %959 = vmatmul.f32.gmra.mxu0 %v935
        %v960 = vpop.f32.mrf.mxu0
        %v961 = vadd.f32 0.0, %v960
        %962 = vmatmul.f32.gmra.mxu0 %v936
        %v963 = vpop.f32.mrf.mxu0
        %v964 = vadd.f32 0.0, %v963
        %965 = vmatmul.f32.gmra.mxu0 %v937
        %v966 = vpop.f32.mrf.mxu0
        %v967 = vadd.f32 0.0, %v966
        %968 = vmatmul.f32.gmra.mxu0 %v938
        %v969 = vpop.f32.mrf.mxu0
        %v970 = vadd.f32 0.0, %v969
        %971 = vdwg.mxu0
        %v972 = vadd.f32 %v939, %v961
        %v973 = vadd.f32 %v940, %v964
        %v974 = vadd.f32 %v941, %v967
        %v975 = vadd.f32 %v942, %v970
        %976 = vst [vmem:[#allocation2] sm:$0xff] %v972
        %977 = vst [vmem:[#allocation2 + $0x8] sm:$0xff] %v973
        %978 = vst [vmem:[#allocation2 + $0x10] sm:$0xff] %v974
        %979 = vst [vmem:[#allocation2 + $0x18] sm:$0xff] %v975
        %p980 = scmp.eq.s32.totalorder %s40, 2
        // Predicated region
        $region97: #{tpu_custom_call.1} parent=67 // pred_check
          %p981 = pneg %p980
        $region98: #{tpu_custom_call.1} parent=67 // pred_check_branch
          %983 = sbr.rel (%p981) target = $region100
        $region99: #{tpu_custom_call.1} parent=67 // pred_region
          %s984 = scalar_lea.vmem [#allocation9], %s920
          %v985 = vld [vmem:[%s984] sm:$0xff]
          %v986 = vld [vmem:[%s984 + $0x8] sm:$0xff]
          %v987 = vld [vmem:[%s984 + $0x10] sm:$0xff]
          %v988 = vld [vmem:[%s984 + $0x18] sm:$0xff]
          %s989 = sld [smem:[#allocation3]]
          %s990 = sadd.f32 %s989, 1.0
          %v991 = vstv %s990
          %v992 = vmul.f32 %v991, %v985
          %v993 = vmul.f32 %v991, %v986
          %v994 = vmul.f32 %v991, %v987
          %v995 = vmul.f32 %v991, %v988
          %v996 = vld [vmem:[#allocation2] sm:$0xff]
          %v997 = vld [vmem:[#allocation2 + $0x8] sm:$0xff]
          %v998 = vld [vmem:[#allocation2 + $0x10] sm:$0xff]
          %v999 = vld [vmem:[#allocation2 + $0x18] sm:$0xff]
          %v1000 = vadd.f32 %v992, %v996
          %v1001 = vadd.f32 %v993, %v997
          %v1002 = vadd.f32 %v994, %v998
          %v1003 = vadd.f32 %v995, %v999
          %v1004 = vld [vmem:[#allocation12] sm:$0xff]
          %v1005 = vld [vmem:[#allocation12 + $0x8] sm:$0xff]
          %v1006 = vld [vmem:[#allocation12 + $0x10] sm:$0xff]
          %v1007 = vld [vmem:[#allocation12 + $0x18] sm:$0xff]
          %v1008 = vld [vmem:[#allocation12 + $0x20] sm:$0xff]
          %v1009 = vld [vmem:[#allocation12 + $0x28] sm:$0xff]
          %v1010 = vld [vmem:[#allocation12 + $0x30] sm:$0xff]
          %v1011 = vld [vmem:[#allocation12 + $0x38] sm:$0xff]
          %v1012 = vld [vmem:[#allocation12 + $0x40] sm:$0xff]
          %v1013 = vld [vmem:[#allocation12 + $0x48] sm:$0xff]
          %v1014 = vld [vmem:[#allocation12 + $0x50] sm:$0xff]
          %v1015 = vld [vmem:[#allocation12 + $0x58] sm:$0xff]
          %v1016 = vld [vmem:[#allocation12 + $0x60] sm:$0xff]
          %v1017 = vld [vmem:[#allocation12 + $0x68] sm:$0xff]
          %v1018 = vld [vmem:[#allocation12 + $0x70] sm:$0xff]
          %v1019 = vld [vmem:[#allocation12 + $0x78] sm:$0xff]
          %v1020 = vld [vmem:[%s6] sm:$0x1]
          %v1022 = vperm.slane %v1020, 0
          %1024 = vmatpush.msra.mxu0 %v1019
          %1025 = vmatpush.msra.mxu0 %v1018
          %1026 = vmatpush.msra.mxu0 %v1017
          %1027 = vmatpush.msra.mxu0 %v1016
          %1028 = vmatpush.msra.mxu0 %v1015
          %1029 = vmatpush.msra.mxu0 %v1014
          %1030 = vmatpush.msra.mxu0 %v1013
          %1031 = vmatpush.msra.mxu0 %v1012
          %1032 = vmatpush.msra.mxu0 %v1011
          %1033 = vmatpush.msra.mxu0 %v1010
          %1034 = vmatpush.msra.mxu0 %v1009
          %1035 = vmatpush.msra.mxu0 %v1008
          %1036 = vmatpush.msra.mxu0 %v1007
          %1037 = vmatpush.msra.mxu0 %v1006
          %1038 = vmatpush.msra.mxu0 %v1005
          %1039 = vmatpush.msra.mxu0 %v1004
          %1040 = vmatmul.f32.gmra.mxu0 %v1000
          %v1041 = vpop.f32.mrf.mxu0
          %v1042 = vadd.f32 %v1022, %v1041
          %1043 = vmatmul.f32.gmra.mxu0 %v1001
          %v1044 = vpop.f32.mrf.mxu0
          %v1045 = vadd.f32 %v1022, %v1044
          %1046 = vmatmul.f32.gmra.mxu0 %v1002
          %v1047 = vpop.f32.mrf.mxu0
          %v1048 = vadd.f32 %v1022, %v1047
          %1049 = vmatmul.f32.gmra.mxu0 %v1003
          %v1050 = vpop.f32.mrf.mxu0
          %v1051 = vadd.f32 %v1022, %v1050
          %1052 = vdwg.mxu0
          %v1053 = vlaneseq
          %v1054 = vand.u32 %v1053, 127
          %vm1055 = vcmp.lt.s32.totalorder %v1054, 32
          %v1056 = vsel %vm1055, 1, 0
          %v1057 = vcvt.s32.f32 %v1056
          %1058 = vadd.xlane.f32.xlu0 %v1042
          %v1059 = vpop.xlane.xlu0 %1058
          %1060 = vadd.xlane.f32.xlu0 %v1045
          %v1061 = vpop.xlane.xlu0 %1060
          %1062 = vadd.xlane.f32.xlu0 %v1048
          %v1063 = vpop.xlane.xlu0 %1062
          %1064 = vadd.xlane.f32.xlu0 %v1051
          %v1065 = vpop.xlane.xlu0 %1064
          %v1066 = vmul.f32 %v1059, 0.03125
          %v1067 = vmul.f32 %v1061, 0.03125
          %v1068 = vmul.f32 %v1063, 0.03125
          %v1069 = vmul.f32 %v1065, 0.03125
          %v1070 = vsub.f32 %v1042, %v1066
          %v1071 = vsub.f32 %v1045, %v1067
          %v1072 = vsub.f32 %v1048, %v1068
          %v1073 = vsub.f32 %v1051, %v1069
          %v1074 = vmul.f32 %v1070, %v1057
          %v1075 = vmul.f32 %v1071, %v1057
          %v1076 = vmul.f32 %v1072, %v1057
          %v1077 = vmul.f32 %v1073, %v1057
          %v1078 = vmul.f32 %v1074, %v1074
          %v1079 = vmul.f32 %v1075, %v1075
          %v1080 = vmul.f32 %v1076, %v1076
          %v1081 = vmul.f32 %v1077, %v1077
          %1082 = vadd.xlane.f32.xlu0 %v1078
          %v1083 = vpop.xlane.xlu0 %1082
          %1084 = vadd.xlane.f32.xlu0 %v1079
          %v1085 = vpop.xlane.xlu0 %1084
          %1086 = vadd.xlane.f32.xlu0 %v1080
          %v1087 = vpop.xlane.xlu0 %1086
          %1088 = vadd.xlane.f32.xlu0 %v1081
          %v1089 = vpop.xlane.xlu0 %1088
          %v1090 = vmul.f32 %v1083, 0.03125
          %v1091 = vmul.f32 %v1085, 0.03125
          %v1092 = vmul.f32 %v1087, 0.03125
          %v1093 = vmul.f32 %v1089, 0.03125
          %v1094 = vadd.f32 %v1090, 1e-05
          %v1095 = vadd.f32 %v1091, 1e-05
          %v1096 = vadd.f32 %v1092, 1e-05
          %v1097 = vadd.f32 %v1093, 1e-05
          %v1098 = vrsqrt.pop %v1094
          %v1099 = vmul.f32 %v1098, %v1094
          %v1100 = vmul.f32 %v1099, %v1098
          %v1101 = vmul.f32 0.5, %v1100
          %v1102 = vsub.f32 1.5, %v1101
          %v1103 = vmul.f32 %v1098, %v1102
          %vm1104 = vweird.f32 %v1094
          %vm1105 = vweird.f32 %v1098
          %vm1106 = vmor %vm1104, %vm1105
          %v1107 = vsel %vm1106, %v1098, %v1103
          %v1108 = vrsqrt.pop %v1095
          %v1109 = vmul.f32 %v1108, %v1095
          %v1110 = vmul.f32 %v1109, %v1108
          %v1111 = vmul.f32 0.5, %v1110
          %v1112 = vsub.f32 1.5, %v1111
          %v1113 = vmul.f32 %v1108, %v1112
          %vm1114 = vweird.f32 %v1095
          %vm1115 = vweird.f32 %v1108
          %vm1116 = vmor %vm1114, %vm1115
          %v1117 = vsel %vm1116, %v1108, %v1113
          %v1118 = vrsqrt.pop %v1096
          %v1119 = vmul.f32 %v1118, %v1096
          %v1120 = vmul.f32 %v1119, %v1118
          %v1121 = vmul.f32 0.5, %v1120
          %v1122 = vsub.f32 1.5, %v1121
          %v1123 = vmul.f32 %v1118, %v1122
          %vm1124 = vweird.f32 %v1096
          %vm1125 = vweird.f32 %v1118
          %vm1126 = vmor %vm1124, %vm1125
          %v1127 = vsel %vm1126, %v1118, %v1123
          %v1128 = vrsqrt.pop %v1097
          %v1129 = vmul.f32 %v1128, %v1097
          %v1130 = vmul.f32 %v1129, %v1128
          %v1131 = vmul.f32 0.5, %v1130
          %v1132 = vsub.f32 1.5, %v1131
          %v1133 = vmul.f32 %v1128, %v1132
          %vm1134 = vweird.f32 %v1097
          %vm1135 = vweird.f32 %v1128
          %vm1136 = vmor %vm1134, %vm1135
          %v1137 = vsel %vm1136, %v1128, %v1133
          %v1138 = vmul.f32 %v1074, %v1107
          %v1139 = vmul.f32 %v1075, %v1117
          %v1140 = vmul.f32 %v1076, %v1127
          %v1141 = vmul.f32 %v1077, %v1137
          %v1142 = vld [vmem:[%s7] sm:$0x1]
          %v1144 = vperm.slane %v1142, 0
          %v1146 = vmul.f32 %v1138, %v1144
          %v1147 = vmul.f32 %v1139, %v1144
          %v1148 = vmul.f32 %v1140, %v1144
          %v1149 = vmul.f32 %v1141, %v1144
          %v1150 = vld [vmem:[%s8] sm:$0x1]
          %v1152 = vperm.slane %v1150, 0
          %v1154 = vadd.f32 %v1146, %v1152
          %v1155 = vadd.f32 %v1147, %v1152
          %v1156 = vadd.f32 %v1148, %v1152
          %v1157 = vadd.f32 %v1149, %v1152
          %v1158 = vmax.f32 %v1154, 0.0
          %v1159 = vmax.f32 %v1155, 0.0
          %v1160 = vmax.f32 %v1156, 0.0
          %v1161 = vmax.f32 %v1157, 0.0
          %v1162 = vld [vmem:[#allocation13] sm:$0xff]
          %v1163 = vld [vmem:[#allocation13 + $0x8] sm:$0xff]
          %v1164 = vld [vmem:[#allocation13 + $0x10] sm:$0xff]
          %v1165 = vld [vmem:[#allocation13 + $0x18] sm:$0xff]
          %v1166 = vld [vmem:[#allocation13 + $0x20] sm:$0xff]
          %v1167 = vld [vmem:[#allocation13 + $0x28] sm:$0xff]
          %v1168 = vld [vmem:[#allocation13 + $0x30] sm:$0xff]
          %v1169 = vld [vmem:[#allocation13 + $0x38] sm:$0xff]
          %v1170 = vld [vmem:[#allocation13 + $0x40] sm:$0xff]
          %v1171 = vld [vmem:[#allocation13 + $0x48] sm:$0xff]
          %v1172 = vld [vmem:[#allocation13 + $0x50] sm:$0xff]
          %v1173 = vld [vmem:[#allocation13 + $0x58] sm:$0xff]
          %v1174 = vld [vmem:[#allocation13 + $0x60] sm:$0xff]
          %v1175 = vld [vmem:[#allocation13 + $0x68] sm:$0xff]
          %v1176 = vld [vmem:[#allocation13 + $0x70] sm:$0xff]
          %v1177 = vld [vmem:[#allocation13 + $0x78] sm:$0xff]
          %v1178 = vld [vmem:[%s10] sm:$0x1]
          %v1180 = vperm.slane %v1178, 0
          %1182 = vmatpush.msra.mxu0 %v1177
          %1183 = vmatpush.msra.mxu0 %v1176
          %1184 = vmatpush.msra.mxu0 %v1175
          %1185 = vmatpush.msra.mxu0 %v1174
          %1186 = vmatpush.msra.mxu0 %v1173
          %1187 = vmatpush.msra.mxu0 %v1172
          %1188 = vmatpush.msra.mxu0 %v1171
          %1189 = vmatpush.msra.mxu0 %v1170
          %1190 = vmatpush.msra.mxu0 %v1169
          %1191 = vmatpush.msra.mxu0 %v1168
          %1192 = vmatpush.msra.mxu0 %v1167
          %1193 = vmatpush.msra.mxu0 %v1166
          %1194 = vmatpush.msra.mxu0 %v1165
          %1195 = vmatpush.msra.mxu0 %v1164
          %1196 = vmatpush.msra.mxu0 %v1163
          %1197 = vmatpush.msra.mxu0 %v1162
          %1198 = vmatmul.f32.gmra.mxu0 %v1158
          %v1199 = vpop.f32.mrf.mxu0
          %v1200 = vadd.f32 %v1180, %v1199
          %1201 = vmatmul.f32.gmra.mxu0 %v1159
          %v1202 = vpop.f32.mrf.mxu0
          %v1203 = vadd.f32 %v1180, %v1202
          %1204 = vmatmul.f32.gmra.mxu0 %v1160
          %v1205 = vpop.f32.mrf.mxu0
          %v1206 = vadd.f32 %v1180, %v1205
          %1207 = vmatmul.f32.gmra.mxu0 %v1161
          %v1208 = vpop.f32.mrf.mxu0
          %v1209 = vadd.f32 %v1180, %v1208
          %1210 = vdwg.mxu0
          %1211 = vst [vmem:[%s549] sm:$0xff] %v1200
          %1212 = vst [vmem:[%s549 + $0x8] sm:$0xff] %v1203
          %1213 = vst [vmem:[%s549 + $0x10] sm:$0xff] %v1206
          %1214 = vst [vmem:[%s549 + $0x18] sm:$0xff] %v1209
        $region100: #{tpu_custom_call.1} parent=67 // pred_fallthru
          _
        %s1215 = sand.u32 %s322, 1
        %s1216 = scalar_lea.sflag [#allocation6], %s1215
        %s1217 = sand.u32 %s322, 1
        %s1218 = smul.addr %s1217, 32
        %s1219 = scalar_lea.vmem [#allocation15], %s1218
        // Predicated region
        $region101: #{tpu_custom_call.1} parent=67 // pred_check
          %p1220 = pneg %p332
        $region102: #{tpu_custom_call.1} parent=67 // pred_check_branch
          %1222 = sbr.rel (%p1220) target = $region104
        $region103: #{tpu_custom_call.1} parent=67 // pred_region
          %s1223 = smul.u32 4, %s39
          %1225 = vsyncadd %s1216, 0
          %s1226 = smul.addr %s1223, 8
          %s1227 = scalar_lea.hbm %s12, %s1226
          %s1228 = sshll.u32 %s1219, 4
          %s1229 = int_to_ptr.vmem [resolvable:$true] %s1228
          %s1230 = sshll.u32 %s1227, 4
          %s1231 = int_to_ptr.hbm [resolvable:$true] %s1230
          %1236 = dma.vmem_to_hbm [thread:$0]  %s1229, 512, %s1231, %s1216, 128, 128, 8
        $region104: #{tpu_custom_call.1} parent=67 // pred_fallthru
          _
      $region68: #{tpu_custom_call.1} parent=5 // pred_fallthru
        _
      %p1237 = scmp.le.s32.totalorder 2, %s30
      // Predicated region
      $region105: #{tpu_custom_call.1} parent=5 // pred_check
        %p1238 = pneg %p1237
      $region106: #{tpu_custom_call.1} parent=5 // pred_check_branch
        %1240 = sbr.rel (%p1238) target = $region108
      $region107: #{tpu_custom_call.1} parent=5 // pred_region
        %s1241 = ssub.s32 %s30, 2
        // Predicated region
        $region109: #{tpu_custom_call.1} parent=107 // pred_check
          %p1242 = pneg %p338
        $region110: #{tpu_custom_call.1} parent=107 // pred_check_branch
          %1244 = sbr.rel (%p1242) target = $region112
        $region111: #{tpu_custom_call.1} parent=107 // pred_region
          %s1245 = sand.u32 %s323, 1
          %s1246 = scalar_lea.sflag [#allocation6], %s1245
          %s1247 = sand.u32 %s323, 1
          %s1248 = smul.addr %s1247, 32
          %s1249 = scalar_lea.vmem [#allocation15], %s1248
          %1251 = dma.done %s1246, 512
        $region112: #{tpu_custom_call.1} parent=107 // pred_fallthru
          _
      $region108: #{tpu_custom_call.1} parent=5 // pred_fallthru
        _
    $region6: #{tpu_custom_call.1} parent=1 // loop_footer
      %s34 = sadd.s32 1, %s30
    $region7: #{tpu_custom_call.1} parent=1 // loop_footer_branch
      %29 = sbr.rel target = $region3
    $region8: #{tpu_custom_call.1} parent=1 // loop_exit
      _
    %1252 = vsyncpa [#allocation5], 1
    %s1253 = scalar_lea.sflag [#allocation5], 1
    %1254 = vsyncpa %s1253, 1
    %1255 = vsyncpa [#allocation8], 1
    %s1256 = scalar_lea.sflag [#allocation8], 1
    %1257 = vsyncpa %s1256, 1
    %1258 = vsyncpa [#allocation11], 1
    %1259 = vsyncpa [#allocation14], 1
    %1260 = vsyncpa [#allocation6], 1
    %s1261 = scalar_lea.sflag [#allocation6], 1
    %1262 = vsyncpa %s1261, 1

</llo_original>
